<compile_context>
chip_gen: v5e
topology: v5e:2x2
jax: 0.10.0
libtpu: 0.0.40
codegen_flags: <defaults>
</compile_context>

<pallas_src>
import functools

import jax
import jax.numpy as jnp
from jax.experimental import pallas as pl
from jax.experimental.pallas import tpu as pltpu


def _adaptive_bins(size, nbins):
    """torch.nn.AdaptiveMaxPool2d bin boundaries: [floor(k*S/n), ceil((k+1)*S/n))."""
    return tuple(
        ((k * size) // nbins, -((-(k + 1) * size) // nbins)) for k in range(nbins)
    )


# ----------------------------------------------------------------------------
# Kernel 1 (fused forward): per batch sample, entirely in VMEM:
#   feat = relu(x @ Wb)                  (backbone stand-in, 1x1 conv)
#   p1/p2/p3 = relu(feat @ Wp_k)         (branch stand-ins, 1x1 conv)
#   stripe/global max pools (pool == 'max'; 'avg' would swap max -> mean)
#   f_k = relu(BN_k(pooled_k @ Wr_k))    (reduction_0..7, eval-mode BN folded)
# Output rows (N, 8, feats) in the order
#   [fg_p1, fg_p2, fg_p3, f0_p2, f1_p2, f0_p3, f1_p3, f2_p3]
# ----------------------------------------------------------------------------
def _mgn_fused_kernel(x_ref, wb_ref, w1_ref, w2_ref, w3_ref, wr_ref,
                      sc_ref, sh_ref, out_ref, *, n_rows, rows2, rows3):
    f32 = jnp.float32
    bf16 = jnp.bfloat16

    x = x_ref[0]                                                    # (P, Cin) bf16
    feat = jnp.maximum(
        jnp.dot(x, wb_ref[...], preferred_element_type=f32), 0.0)   # (P, Cmid) f32
    feat_b = feat.astype(bf16)

    p1 = jnp.maximum(
        jnp.dot(feat_b, w1_ref[...], preferred_element_type=f32), 0.0)
    p2 = jnp.maximum(
        jnp.dot(feat_b, w2_ref[...], preferred_element_type=f32), 0.0)
    p3 = jnp.maximum(
        jnp.dot(feat_b, w3_ref[...], preferred_element_type=f32), 0.0)

    def rmax(v, r0, r1):                  # max over flattened rows [r0, r1)
        return jnp.max(v[r0:r1], axis=0, keepdims=True)             # (1, C) f32

    # Stripe maxima first; globals derived from them (stripes cover [0, H)).
    zg_p1 = rmax(p1, 0, n_rows)
    z_p2 = [rmax(p2, r0, r1) for (r0, r1) in rows2]                 # z0_p2, z1_p2
    z_p3 = [rmax(p3, r0, r1) for (r0, r1) in rows3]                 # z0..z2_p3
    zg_p2 = jnp.maximum(z_p2[0], z_p2[1])
    zg_p3 = jnp.maximum(jnp.maximum(z_p3[0], z_p3[1]), z_p3[2])

    pooled = [zg_p1, zg_p2, zg_p3, z_p2[0], z_p2[1], z_p3[0], z_p3[1], z_p3[2]]

    # 8 reduction blocks; write each (1, F) row straight into the output block
    # (avoids an (8, F) sublane concatenate).  Epilogue (BN + ReLU) stays f32.
    for k in range(8):
        r = jnp.dot(pooled[k].astype(bf16), wr_ref[k],
                    preferred_element_type=f32)                     # (1, F)
        out_ref[0, k:k + 1, :] = jnp.maximum(
            r * sc_ref[k:k + 1, :] + sh_ref[k:k + 1, :], 0.0)


def mgn_fused(x, wb, w1, w2, w3, wr, bn_scale, bn_shift, H, W):
    n, p, cin = x.shape
    cmid = wb.shape[1]
    cbr = w1.shape[1]
    k, _, f = wr.shape
    rows2 = tuple((s * W, e * W) for s, e in _adaptive_bins(H, 2))
    rows3 = tuple((s * W, e * W) for s, e in _adaptive_bins(H, 3))
    kern = functools.partial(_mgn_fused_kernel, n_rows=p, rows2=rows2, rows3=rows3)
    return pl.pallas_call(
        kern,
        out_shape=jax.ShapeDtypeStruct((n, k, f), jnp.float32),
        grid_spec=pltpu.PrefetchScalarGridSpec(
            num_scalar_prefetch=0,
            grid=(n,),
            in_specs=[
                pl.BlockSpec((1, p, cin), lambda i: (i, 0, 0)),   # per-sample acts
                pl.BlockSpec((cin, cmid), lambda i: (0, 0)),      # weights resident
                pl.BlockSpec((cmid, cbr), lambda i: (0, 0)),
                pl.BlockSpec((cmid, cbr), lambda i: (0, 0)),
                pl.BlockSpec((cmid, cbr), lambda i: (0, 0)),
                pl.BlockSpec((k, cbr, f), lambda i: (0, 0, 0)),
                pl.BlockSpec((k, f), lambda i: (0, 0)),
                pl.BlockSpec((k, f), lambda i: (0, 0)),
            ],
            out_specs=pl.BlockSpec((1, k, f), lambda i: (i, 0, 0)),
        ),
        compiler_params=pltpu.CompilerParams(
            dimension_semantics=("parallel",),          # megacore over batch (v7x)
            vmem_limit_bytes=48 * 1024 * 1024,          # v7x headroom (64 MiB phys)
        ),
    )(x, wb, w1, w2, w3, wr, bn_scale, bn_shift)


# ----------------------------------------------------------------------------
# Kernel 2: the 8 FC classifiers in ONE grid step.
#   fstack: [8, N, F] bf16, wfc: [8, F, NC] bf16, bfc: [8, 1, NC] f32
#   logits[k] = fstack[k] @ wfc[k] + bfc[k]
# ----------------------------------------------------------------------------
def _fc_all_kernel(f_ref, w_ref, b_ref, o_ref):
    for k in range(f_ref.shape[0]):
        o_ref[k] = (
            jnp.dot(f_ref[k], w_ref[k], preferred_element_type=jnp.float32)
            + b_ref[k]
        )


def fc_all(fstack, wfc, bfc):
    k, n, f = fstack.shape
    nc = wfc.shape[2]
    return pl.pallas_call(
        _fc_all_kernel,
        out_shape=jax.ShapeDtypeStruct((k, n, nc), jnp.float32),
        grid_spec=pltpu.PrefetchScalarGridSpec(
            num_scalar_prefetch=0,
            grid=(1,),
            in_specs=[
                pl.BlockSpec((k, n, f), lambda i: (0, 0, 0)),
                pl.BlockSpec((k, f, nc), lambda i: (0, 0, 0)),
                pl.BlockSpec((k, 1, nc), lambda i: (0, 0, 0)),
            ],
            out_specs=pl.BlockSpec((k, n, nc), lambda i: (0, 0, 0)),
        ),
        compiler_params=pltpu.CompilerParams(
            dimension_semantics=("arbitrary",),
            vmem_limit_bytes=48 * 1024 * 1024,
        ),
    )(fstack, wfc, bfc)


# ----------------------------------------------------------------------------
# Parameter construction (deterministic, synthetic) and full forward.
# ----------------------------------------------------------------------------
def init_params(key, c_in, c_mid, c_branch, feats, num_classes):
    ks = jax.random.split(key, 8)
    eps = 1e-5
    bf16 = jnp.bfloat16
    # stand-in backbone + branch 1x1 convs (bf16 weights, f32 accumulation)
    w_backbone = (jax.random.normal(ks[0], (c_in, c_mid), jnp.float32)
                  * (2.0 / c_in) ** 0.5).astype(bf16)
    w_p1 = (jax.random.normal(ks[1], (c_mid, c_branch), jnp.float32)
            * (2.0 / c_mid) ** 0.5).astype(bf16)
    w_p2 = (jax.random.normal(ks[2], (c_mid, c_branch), jnp.float32)
            * (2.0 / c_mid) ** 0.5).astype(bf16)
    w_p3 = (jax.random.normal(ks[3], (c_mid, c_branch), jnp.float32)
            * (2.0 / c_mid) ** 0.5).astype(bf16)
    # 8 reduction blocks: Conv2d(c_branch, feats, 1, bias=False) + BN + ReLU
    # kaiming_normal_(fan_in); BN.weight ~ N(1, 0.02), BN.bias = 0, stats (0, 1)
    wr = (jax.random.normal(ks[4], (8, c_branch, feats), jnp.float32)
          * (2.0 / c_branch) ** 0.5).astype(bf16)
    gamma = 1.0 + 0.02 * jax.random.normal(ks[5], (8, feats), jnp.float32)
    beta = jnp.zeros((8, feats), jnp.float32)
    bn_scale = gamma / jnp.sqrt(1.0 + eps)   # eval-mode BN folded (mean=0, var=1)
    bn_shift = beta
    # 8 FC classifiers: kaiming_normal_(fan_out), bias = 0
    wfc = (jax.random.normal(ks[6], (8, feats, num_classes), jnp.float32)
           * (2.0 / num_classes) ** 0.5).astype(bf16)
    bfc = jnp.zeros((8, 1, num_classes), jnp.float32)
    return dict(w_backbone=w_backbone, w_p1=w_p1, w_p2=w_p2, w_p3=w_p3,
                wr=wr, bn_scale=bn_scale, bn_shift=bn_shift, wfc=wfc, bfc=bfc)


def mgn_forward(x_nchw, params, training=False):
    n, c, h, w = x_nchw.shape
    # NCHW -> [N, H*W, C] channels-last, bf16 for the MXU (f32 accumulation inside)
    x = jnp.transpose(x_nchw, (0, 2, 3, 1)).reshape(n, h * w, c).astype(jnp.bfloat16)

    feats8 = mgn_fused(x, params["w_backbone"], params["w_p1"], params["w_p2"],
                       params["w_p3"], params["wr"], params["bn_scale"],
                       params["bn_shift"], h, w)              # (N, 8, feats) f32

    if training:
        fstack = jnp.transpose(feats8, (1, 0, 2)).astype(jnp.bfloat16)  # (8, N, F)
        logits = fc_all(fstack, params["wfc"], params["bfc"])  # (8, N, num_classes)
        logits_list = [logits[k] for k in range(8)]            # l_p1..l2_p3 order
        triplet_feats = [feats8[:, 0, :], feats8[:, 1, :], feats8[:, 2, :]]
        return logits_list, triplet_feats
    # predict = cat([fg_p1, fg_p2, fg_p3, f0_p2, f1_p2, f0_p3, f1_p3, f2_p3], dim=1)
    return feats8.reshape(n, -1)


if __name__ == "__main__":
    key = jax.random.PRNGKey(0)
    k_x, k_p = jax.random.split(key)

    # Small, MGN-consistent shapes (real MGN: 24x8 map, C=2048, feats=256).
    # c_mid/c_branch = 128 so the hot matmul lanes are fully dense.
    N, C_IN, H, W = 2, 4, 12, 4
    C_MID, C_BRANCH, FEATS, NUM_CLASSES = 128, 128, 32, 16

    x = jax.random.normal(k_x, (N, C_IN, H, W), jnp.float32)   # NCHW like torch
    params = init_params(k_p, C_IN, C_MID, C_BRANCH, FEATS, NUM_CLASSES)

    # eval path: predict features, shape (N, 8 * feats)
    predict = mgn_forward(x, params, training=False)
    jax.block_until_ready(predict)
    assert predict.shape == (N, 8 * FEATS)

    # training path: 8 logit heads + 3 triplet features
    logits_list, trip_feats = mgn_forward(x, params, training=True)
    jax.block_until_ready(logits_list)
    jax.block_until_ready(trip_feats)
    assert all(l.shape == (N, NUM_CLASSES) for l in logits_list)
    assert all(t.shape == (N, FEATS) for t in trip_feats)

    print("KERNEL_OK")
</pallas_src>

<mosaic_0001>
module attributes {stable_mosaic.version = 11 : i64} {
  func.func @_mgn_fused_kernel(%arg0: i32, %arg1: memref<1x48x4xbf16, #tpu.memory_space<vmem>>, %arg2: memref<4x128xbf16, #tpu.memory_space<vmem>>, %arg3: memref<128x128xbf16, #tpu.memory_space<vmem>>, %arg4: memref<128x128xbf16, #tpu.memory_space<vmem>>, %arg5: memref<128x128xbf16, #tpu.memory_space<vmem>>, %arg6: memref<8x128x32xbf16, #tpu.memory_space<vmem>>, %arg7: memref<8x32xf32, #tpu.memory_space<vmem>>, %arg8: memref<8x32xf32, #tpu.memory_space<vmem>>, %arg9: memref<1x8x32xf32, #tpu.memory_space<vmem>>) attributes {dimension_semantics = [#tpu.dimension_semantics<parallel>], iteration_bounds = array<i64: 2>, scalar_prefetch = 0 : i64, scratch_operands = 0 : i64, tpu.core_type = #tpu.core_type<tc>, window_params = [{transform_indices = @transform_0, window_bounds = array<i64: 1, 48, 4>}, {pipeline_mode = #tpu.pipeline_mode<synchronous>, transform_indices = @transform_1, window_bounds = array<i64: 4, 128>}, {pipeline_mode = #tpu.pipeline_mode<synchronous>, transform_indices = @transform_2, window_bounds = array<i64: 128, 128>}, {pipeline_mode = #tpu.pipeline_mode<synchronous>, transform_indices = @transform_3, window_bounds = array<i64: 128, 128>}, {pipeline_mode = #tpu.pipeline_mode<synchronous>, transform_indices = @transform_4, window_bounds = array<i64: 128, 128>}, {pipeline_mode = #tpu.pipeline_mode<synchronous>, transform_indices = @transform_5, window_bounds = array<i64: 8, 128, 32>}, {pipeline_mode = #tpu.pipeline_mode<synchronous>, transform_indices = @transform_6, window_bounds = array<i64: 8, 32>}, {pipeline_mode = #tpu.pipeline_mode<synchronous>, transform_indices = @transform_7, window_bounds = array<i64: 8, 32>}, {transform_indices = @transform_8, window_bounds = array<i64: 1, 8, 32>}]} {
    %c0 = arith.constant 0 : index
    %c0_0 = arith.constant 0 : index
    %c0_1 = arith.constant 0 : index
    %0 = vector.load %arg1[%c0, %c0_0, %c0_1] : memref<1x48x4xbf16, #tpu.memory_space<vmem>>, vector<1x48x4xbf16>
    %1 = vector.shape_cast %0 : vector<1x48x4xbf16> to vector<48x4xbf16>
    %c0_2 = arith.constant 0 : index
    %c0_3 = arith.constant 0 : index
    %2 = vector.load %arg2[%c0_2, %c0_3] : memref<4x128xbf16, #tpu.memory_space<vmem>>, vector<4x128xbf16>
    %cst = arith.constant dense<0.000000e+00> : vector<48x128xf32>
    %3 = tpu.matmul %1, %2, %cst {dimension_numbers = #tpu.dot_dimension_numbers<[1], [0], [0], [1], [0, 0, 1, 1], [], []>} : vector<48x4xbf16>, vector<4x128xbf16>, vector<48x128xf32> -> vector<48x128xf32>
    %cst_4 = arith.constant 0.000000e+00 : f32
    %4 = vector.broadcast %cst_4 : f32 to vector<48x128xf32>
    %5 = arith.maximumf %3, %4 : vector<48x128xf32>
    %6 = arith.truncf %5 : vector<48x128xf32> to vector<48x128xbf16>
    %c0_5 = arith.constant 0 : index
    %c0_6 = arith.constant 0 : index
    %7 = vector.load %arg3[%c0_5, %c0_6] : memref<128x128xbf16, #tpu.memory_space<vmem>>, vector<128x128xbf16>
    %cst_7 = arith.constant dense<0.000000e+00> : vector<48x128xf32>
    %8 = tpu.matmul %6, %7, %cst_7 {dimension_numbers = #tpu.dot_dimension_numbers<[1], [0], [0], [1], [0, 0, 1, 1], [], []>} : vector<48x128xbf16>, vector<128x128xbf16>, vector<48x128xf32> -> vector<48x128xf32>
    %cst_8 = arith.constant 0.000000e+00 : f32
    %9 = vector.broadcast %cst_8 : f32 to vector<48x128xf32>
    %10 = arith.maximumf %8, %9 : vector<48x128xf32>
    %c0_9 = arith.constant 0 : index
    %c0_10 = arith.constant 0 : index
    %11 = vector.load %arg4[%c0_9, %c0_10] : memref<128x128xbf16, #tpu.memory_space<vmem>>, vector<128x128xbf16>
    %cst_11 = arith.constant dense<0.000000e+00> : vector<48x128xf32>
    %12 = tpu.matmul %6, %11, %cst_11 {dimension_numbers = #tpu.dot_dimension_numbers<[1], [0], [0], [1], [0, 0, 1, 1], [], []>} : vector<48x128xbf16>, vector<128x128xbf16>, vector<48x128xf32> -> vector<48x128xf32>
    %cst_12 = arith.constant 0.000000e+00 : f32
    %13 = vector.broadcast %cst_12 : f32 to vector<48x128xf32>
    %14 = arith.maximumf %12, %13 : vector<48x128xf32>
    %c0_13 = arith.constant 0 : index
    %c0_14 = arith.constant 0 : index
    %15 = vector.load %arg5[%c0_13, %c0_14] : memref<128x128xbf16, #tpu.memory_space<vmem>>, vector<128x128xbf16>
    %cst_15 = arith.constant dense<0.000000e+00> : vector<48x128xf32>
    %16 = tpu.matmul %6, %15, %cst_15 {dimension_numbers = #tpu.dot_dimension_numbers<[1], [0], [0], [1], [0, 0, 1, 1], [], []>} : vector<48x128xbf16>, vector<128x128xbf16>, vector<48x128xf32> -> vector<48x128xf32>
    %cst_16 = arith.constant 0.000000e+00 : f32
    %17 = vector.broadcast %cst_16 : f32 to vector<48x128xf32>
    %18 = arith.maximumf %16, %17 : vector<48x128xf32>
    %cst_17 = arith.constant dense<0xFF800000> : vector<128xf32>
    %19 = vector.multi_reduction <maximumf>, %10, %cst_17 [0] : vector<48x128xf32> to vector<128xf32>
    %20 = vector.shape_cast %19 : vector<128xf32> to vector<1x128xf32>
    %21 = vector.extract_strided_slice %14 {offsets = [0, 0], sizes = [24, 128], strides = [1, 1]} : vector<48x128xf32> to vector<24x128xf32>
    %cst_18 = arith.constant dense<0xFF800000> : vector<128xf32>
    %22 = vector.multi_reduction <maximumf>, %21, %cst_18 [0] : vector<24x128xf32> to vector<128xf32>
    %23 = vector.shape_cast %22 : vector<128xf32> to vector<1x128xf32>
    %24 = vector.extract_strided_slice %14 {offsets = [24, 0], sizes = [24, 128], strides = [1, 1]} : vector<48x128xf32> to vector<24x128xf32>
    %cst_19 = arith.constant dense<0xFF800000> : vector<128xf32>
    %25 = vector.multi_reduction <maximumf>, %24, %cst_19 [0] : vector<24x128xf32> to vector<128xf32>
    %26 = vector.shape_cast %25 : vector<128xf32> to vector<1x128xf32>
    %27 = vector.extract_strided_slice %18 {offsets = [0, 0], sizes = [16, 128], strides = [1, 1]} : vector<48x128xf32> to vector<16x128xf32>
    %cst_20 = arith.constant dense<0xFF800000> : vector<128xf32>
    %28 = vector.multi_reduction <maximumf>, %27, %cst_20 [0] : vector<16x128xf32> to vector<128xf32>
    %29 = vector.shape_cast %28 : vector<128xf32> to vector<1x128xf32>
    %30 = vector.extract_strided_slice %18 {offsets = [16, 0], sizes = [16, 128], strides = [1, 1]} : vector<48x128xf32> to vector<16x128xf32>
    %cst_21 = arith.constant dense<0xFF800000> : vector<128xf32>
    %31 = vector.multi_reduction <maximumf>, %30, %cst_21 [0] : vector<16x128xf32> to vector<128xf32>
    %32 = vector.shape_cast %31 : vector<128xf32> to vector<1x128xf32>
    %33 = vector.extract_strided_slice %18 {offsets = [32, 0], sizes = [16, 128], strides = [1, 1]} : vector<48x128xf32> to vector<16x128xf32>
    %cst_22 = arith.constant dense<0xFF800000> : vector<128xf32>
    %34 = vector.multi_reduction <maximumf>, %33, %cst_22 [0] : vector<16x128xf32> to vector<128xf32>
    %35 = vector.shape_cast %34 : vector<128xf32> to vector<1x128xf32>
    %36 = arith.maximumf %23, %26 : vector<1x128xf32>
    %37 = arith.maximumf %29, %32 : vector<1x128xf32>
    %38 = arith.maximumf %37, %35 : vector<1x128xf32>
    %39 = arith.truncf %20 : vector<1x128xf32> to vector<1x128xbf16>
    %c0_23 = arith.constant 0 : index
    %c0_24 = arith.constant 0 : index
    %c0_25 = arith.constant 0 : index
    %40 = vector.load %arg6[%c0_23, %c0_24, %c0_25] : memref<8x128x32xbf16, #tpu.memory_space<vmem>>, vector<1x128x32xbf16>
    %41 = vector.shape_cast %40 : vector<1x128x32xbf16> to vector<128x32xbf16>
    %cst_26 = arith.constant dense<0.000000e+00> : vector<1x32xf32>
    %42 = tpu.matmul %39, %41, %cst_26 {dimension_numbers = #tpu.dot_dimension_numbers<[1], [0], [0], [1], [0, 0, 1, 1], [], []>} : vector<1x128xbf16>, vector<128x32xbf16>, vector<1x32xf32> -> vector<1x32xf32>
    %c0_27 = arith.constant 0 : index
    %c0_28 = arith.constant 0 : index
    %43 = vector.load %arg7[%c0_27, %c0_28] : memref<8x32xf32, #tpu.memory_space<vmem>>, vector<1x32xf32>
    %44 = arith.mulf %42, %43 : vector<1x32xf32>
    %c0_29 = arith.constant 0 : index
    %c0_30 = arith.constant 0 : index
    %45 = vector.load %arg8[%c0_29, %c0_30] : memref<8x32xf32, #tpu.memory_space<vmem>>, vector<1x32xf32>
    %46 = arith.addf %44, %45 : vector<1x32xf32>
    %cst_31 = arith.constant 0.000000e+00 : f32
    %47 = vector.broadcast %cst_31 : f32 to vector<1x32xf32>
    %48 = arith.maximumf %46, %47 : vector<1x32xf32>
    %c0_32 = arith.constant 0 : index
    %c0_33 = arith.constant 0 : index
    %c0_34 = arith.constant 0 : index
    %49 = vector.load %arg9[%c0_32, %c0_33, %c0_34] : memref<1x8x32xf32, #tpu.memory_space<vmem>>, vector<1x1x32xf32>
    %50 = vector.shape_cast %49 : vector<1x1x32xf32> to vector<1x32xf32>
    %51 = vector.shape_cast %48 : vector<1x32xf32> to vector<1x1x32xf32>
    tpu.vector_store %arg9[%c0_32, %c0_33, %c0_34], %51 {strides = array<i32>} : memref<1x8x32xf32, #tpu.memory_space<vmem>>, vector<1x1x32xf32>,
    %52 = arith.truncf %36 : vector<1x128xf32> to vector<1x128xbf16>
    %c1 = arith.constant 1 : index
    %c0_35 = arith.constant 0 : index
    %c0_36 = arith.constant 0 : index
    %53 = vector.load %arg6[%c1, %c0_35, %c0_36] : memref<8x128x32xbf16, #tpu.memory_space<vmem>>, vector<1x128x32xbf16>
    %54 = vector.shape_cast %53 : vector<1x128x32xbf16> to vector<128x32xbf16>
    %cst_37 = arith.constant dense<0.000000e+00> : vector<1x32xf32>
    %55 = tpu.matmul %52, %54, %cst_37 {dimension_numbers = #tpu.dot_dimension_numbers<[1], [0], [0], [1], [0, 0, 1, 1], [], []>} : vector<1x128xbf16>, vector<128x32xbf16>, vector<1x32xf32> -> vector<1x32xf32>
    %c1_38 = arith.constant 1 : index
    %c0_39 = arith.constant 0 : index
    %56 = vector.load %arg7[%c1_38, %c0_39] : memref<8x32xf32, #tpu.memory_space<vmem>>, vector<1x32xf32>
    %57 = arith.mulf %55, %56 : vector<1x32xf32>
    %c1_40 = arith.constant 1 : index
    %c0_41 = arith.constant 0 : index
    %58 = vector.load %arg8[%c1_40, %c0_41] : memref<8x32xf32, #tpu.memory_space<vmem>>, vector<1x32xf32>
    %59 = arith.addf %57, %58 : vector<1x32xf32>
    %cst_42 = arith.constant 0.000000e+00 : f32
    %60 = vector.broadcast %cst_42 : f32 to vector<1x32xf32>
    %61 = arith.maximumf %59, %60 : vector<1x32xf32>
    %c0_43 = arith.constant 0 : index
    %c1_44 = arith.constant 1 : index
    %c0_45 = arith.constant 0 : index
    %62 = vector.load %arg9[%c0_43, %c1_44, %c0_45] : memref<1x8x32xf32, #tpu.memory_space<vmem>>, vector<1x1x32xf32>
    %63 = vector.shape_cast %62 : vector<1x1x32xf32> to vector<1x32xf32>
    %64 = vector.shape_cast %61 : vector<1x32xf32> to vector<1x1x32xf32>
    tpu.vector_store %arg9[%c0_43, %c1_44, %c0_45], %64 {strides = array<i32>} : memref<1x8x32xf32, #tpu.memory_space<vmem>>, vector<1x1x32xf32>,
    %65 = arith.truncf %38 : vector<1x128xf32> to vector<1x128xbf16>
    %c2 = arith.constant 2 : index
    %c0_46 = arith.constant 0 : index
    %c0_47 = arith.constant 0 : index
    %66 = vector.load %arg6[%c2, %c0_46, %c0_47] : memref<8x128x32xbf16, #tpu.memory_space<vmem>>, vector<1x128x32xbf16>
    %67 = vector.shape_cast %66 : vector<1x128x32xbf16> to vector<128x32xbf16>
    %cst_48 = arith.constant dense<0.000000e+00> : vector<1x32xf32>
    %68 = tpu.matmul %65, %67, %cst_48 {dimension_numbers = #tpu.dot_dimension_numbers<[1], [0], [0], [1], [0, 0, 1, 1], [], []>} : vector<1x128xbf16>, vector<128x32xbf16>, vector<1x32xf32> -> vector<1x32xf32>
    %c2_49 = arith.constant 2 : index
    %c0_50 = arith.constant 0 : index
    %69 = vector.load %arg7[%c2_49, %c0_50] : memref<8x32xf32, #tpu.memory_space<vmem>>, vector<1x32xf32>
    %70 = arith.mulf %68, %69 : vector<1x32xf32>
    %c2_51 = arith.constant 2 : index
    %c0_52 = arith.constant 0 : index
    %71 = vector.load %arg8[%c2_51, %c0_52] : memref<8x32xf32, #tpu.memory_space<vmem>>, vector<1x32xf32>
    %72 = arith.addf %70, %71 : vector<1x32xf32>
    %cst_53 = arith.constant 0.000000e+00 : f32
    %73 = vector.broadcast %cst_53 : f32 to vector<1x32xf32>
    %74 = arith.maximumf %72, %73 : vector<1x32xf32>
    %c0_54 = arith.constant 0 : index
    %c2_55 = arith.constant 2 : index
    %c0_56 = arith.constant 0 : index
    %75 = vector.load %arg9[%c0_54, %c2_55, %c0_56] : memref<1x8x32xf32, #tpu.memory_space<vmem>>, vector<1x1x32xf32>
    %76 = vector.shape_cast %75 : vector<1x1x32xf32> to vector<1x32xf32>
    %77 = vector.shape_cast %74 : vector<1x32xf32> to vector<1x1x32xf32>
    tpu.vector_store %arg9[%c0_54, %c2_55, %c0_56], %77 {strides = array<i32>} : memref<1x8x32xf32, #tpu.memory_space<vmem>>, vector<1x1x32xf32>,
    %78 = arith.truncf %23 : vector<1x128xf32> to vector<1x128xbf16>
    %c3 = arith.constant 3 : index
    %c0_57 = arith.constant 0 : index
    %c0_58 = arith.constant 0 : index
    %79 = vector.load %arg6[%c3, %c0_57, %c0_58] : memref<8x128x32xbf16, #tpu.memory_space<vmem>>, vector<1x128x32xbf16>
    %80 = vector.shape_cast %79 : vector<1x128x32xbf16> to vector<128x32xbf16>
    %cst_59 = arith.constant dense<0.000000e+00> : vector<1x32xf32>
    %81 = tpu.matmul %78, %80, %cst_59 {dimension_numbers = #tpu.dot_dimension_numbers<[1], [0], [0], [1], [0, 0, 1, 1], [], []>} : vector<1x128xbf16>, vector<128x32xbf16>, vector<1x32xf32> -> vector<1x32xf32>
    %c3_60 = arith.constant 3 : index
    %c0_61 = arith.constant 0 : index
    %82 = vector.load %arg7[%c3_60, %c0_61] : memref<8x32xf32, #tpu.memory_space<vmem>>, vector<1x32xf32>
    %83 = arith.mulf %81, %82 : vector<1x32xf32>
    %c3_62 = arith.constant 3 : index
    %c0_63 = arith.constant 0 : index
    %84 = vector.load %arg8[%c3_62, %c0_63] : memref<8x32xf32, #tpu.memory_space<vmem>>, vector<1x32xf32>
    %85 = arith.addf %83, %84 : vector<1x32xf32>
    %cst_64 = arith.constant 0.000000e+00 : f32
    %86 = vector.broadcast %cst_64 : f32 to vector<1x32xf32>
    %87 = arith.maximumf %85, %86 : vector<1x32xf32>
    %c0_65 = arith.constant 0 : index
    %c3_66 = arith.constant 3 : index
    %c0_67 = arith.constant 0 : index
    %88 = vector.load %arg9[%c0_65, %c3_66, %c0_67] : memref<1x8x32xf32, #tpu.memory_space<vmem>>, vector<1x1x32xf32>
    %89 = vector.shape_cast %88 : vector<1x1x32xf32> to vector<1x32xf32>
    %90 = vector.shape_cast %87 : vector<1x32xf32> to vector<1x1x32xf32>
    tpu.vector_store %arg9[%c0_65, %c3_66, %c0_67], %90 {strides = array<i32>} : memref<1x8x32xf32, #tpu.memory_space<vmem>>, vector<1x1x32xf32>,
    %91 = arith.truncf %26 : vector<1x128xf32> to vector<1x128xbf16>
    %c4 = arith.constant 4 : index
    %c0_68 = arith.constant 0 : index
    %c0_69 = arith.constant 0 : index
    %92 = vector.load %arg6[%c4, %c0_68, %c0_69] : memref<8x128x32xbf16, #tpu.memory_space<vmem>>, vector<1x128x32xbf16>
    %93 = vector.shape_cast %92 : vector<1x128x32xbf16> to vector<128x32xbf16>
    %cst_70 = arith.constant dense<0.000000e+00> : vector<1x32xf32>
    %94 = tpu.matmul %91, %93, %cst_70 {dimension_numbers = #tpu.dot_dimension_numbers<[1], [0], [0], [1], [0, 0, 1, 1], [], []>} : vector<1x128xbf16>, vector<128x32xbf16>, vector<1x32xf32> -> vector<1x32xf32>
    %c4_71 = arith.constant 4 : index
    %c0_72 = arith.constant 0 : index
    %95 = vector.load %arg7[%c4_71, %c0_72] : memref<8x32xf32, #tpu.memory_space<vmem>>, vector<1x32xf32>
    %96 = arith.mulf %94, %95 : vector<1x32xf32>
    %c4_73 = arith.constant 4 : index
    %c0_74 = arith.constant 0 : index
    %97 = vector.load %arg8[%c4_73, %c0_74] : memref<8x32xf32, #tpu.memory_space<vmem>>, vector<1x32xf32>
    %98 = arith.addf %96, %97 : vector<1x32xf32>
    %cst_75 = arith.constant 0.000000e+00 : f32
    %99 = vector.broadcast %cst_75 : f32 to vector<1x32xf32>
    %100 = arith.maximumf %98, %99 : vector<1x32xf32>
    %c0_76 = arith.constant 0 : index
    %c4_77 = arith.constant 4 : index
    %c0_78 = arith.constant 0 : index
    %101 = vector.load %arg9[%c0_76, %c4_77, %c0_78] : memref<1x8x32xf32, #tpu.memory_space<vmem>>, vector<1x1x32xf32>
    %102 = vector.shape_cast %101 : vector<1x1x32xf32> to vector<1x32xf32>
    %103 = vector.shape_cast %100 : vector<1x32xf32> to vector<1x1x32xf32>
    tpu.vector_store %arg9[%c0_76, %c4_77, %c0_78], %103 {strides = array<i32>} : memref<1x8x32xf32, #tpu.memory_space<vmem>>, vector<1x1x32xf32>,
    %104 = arith.truncf %29 : vector<1x128xf32> to vector<1x128xbf16>
    %c5 = arith.constant 5 : index
    %c0_79 = arith.constant 0 : index
    %c0_80 = arith.constant 0 : index
    %105 = vector.load %arg6[%c5, %c0_79, %c0_80] : memref<8x128x32xbf16, #tpu.memory_space<vmem>>, vector<1x128x32xbf16>
    %106 = vector.shape_cast %105 : vector<1x128x32xbf16> to vector<128x32xbf16>
    %cst_81 = arith.constant dense<0.000000e+00> : vector<1x32xf32>
    %107 = tpu.matmul %104, %106, %cst_81 {dimension_numbers = #tpu.dot_dimension_numbers<[1], [0], [0], [1], [0, 0, 1, 1], [], []>} : vector<1x128xbf16>, vector<128x32xbf16>, vector<1x32xf32> -> vector<1x32xf32>
    %c5_82 = arith.constant 5 : index
    %c0_83 = arith.constant 0 : index
    %108 = vector.load %arg7[%c5_82, %c0_83] : memref<8x32xf32, #tpu.memory_space<vmem>>, vector<1x32xf32>
    %109 = arith.mulf %107, %108 : vector<1x32xf32>
    %c5_84 = arith.constant 5 : index
    %c0_85 = arith.constant 0 : index
    %110 = vector.load %arg8[%c5_84, %c0_85] : memref<8x32xf32, #tpu.memory_space<vmem>>, vector<1x32xf32>
    %111 = arith.addf %109, %110 : vector<1x32xf32>
    %cst_86 = arith.constant 0.000000e+00 : f32
    %112 = vector.broadcast %cst_86 : f32 to vector<1x32xf32>
    %113 = arith.maximumf %111, %112 : vector<1x32xf32>
    %c0_87 = arith.constant 0 : index
    %c5_88 = arith.constant 5 : index
    %c0_89 = arith.constant 0 : index
    %114 = vector.load %arg9[%c0_87, %c5_88, %c0_89] : memref<1x8x32xf32, #tpu.memory_space<vmem>>, vector<1x1x32xf32>
    %115 = vector.shape_cast %114 : vector<1x1x32xf32> to vector<1x32xf32>
    %116 = vector.shape_cast %113 : vector<1x32xf32> to vector<1x1x32xf32>
    tpu.vector_store %arg9[%c0_87, %c5_88, %c0_89], %116 {strides = array<i32>} : memref<1x8x32xf32, #tpu.memory_space<vmem>>, vector<1x1x32xf32>,
    %117 = arith.truncf %32 : vector<1x128xf32> to vector<1x128xbf16>
    %c6 = arith.constant 6 : index
    %c0_90 = arith.constant 0 : index
    %c0_91 = arith.constant 0 : index
    %118 = vector.load %arg6[%c6, %c0_90, %c0_91] : memref<8x128x32xbf16, #tpu.memory_space<vmem>>, vector<1x128x32xbf16>
    %119 = vector.shape_cast %118 : vector<1x128x32xbf16> to vector<128x32xbf16>
    %cst_92 = arith.constant dense<0.000000e+00> : vector<1x32xf32>
    %120 = tpu.matmul %117, %119, %cst_92 {dimension_numbers = #tpu.dot_dimension_numbers<[1], [0], [0], [1], [0, 0, 1, 1], [], []>} : vector<1x128xbf16>, vector<128x32xbf16>, vector<1x32xf32> -> vector<1x32xf32>
    %c6_93 = arith.constant 6 : index
    %c0_94 = arith.constant 0 : index
    %121 = vector.load %arg7[%c6_93, %c0_94] : memref<8x32xf32, #tpu.memory_space<vmem>>, vector<1x32xf32>
    %122 = arith.mulf %120, %121 : vector<1x32xf32>
    %c6_95 = arith.constant 6 : index
    %c0_96 = arith.constant 0 : index
    %123 = vector.load %arg8[%c6_95, %c0_96] : memref<8x32xf32, #tpu.memory_space<vmem>>, vector<1x32xf32>
    %124 = arith.addf %122, %123 : vector<1x32xf32>
    %cst_97 = arith.constant 0.000000e+00 : f32
    %125 = vector.broadcast %cst_97 : f32 to vector<1x32xf32>
    %126 = arith.maximumf %124, %125 : vector<1x32xf32>
    %c0_98 = arith.constant 0 : index
    %c6_99 = arith.constant 6 : index
    %c0_100 = arith.constant 0 : index
    %127 = vector.load %arg9[%c0_98, %c6_99, %c0_100] : memref<1x8x32xf32, #tpu.memory_space<vmem>>, vector<1x1x32xf32>
    %128 = vector.shape_cast %127 : vector<1x1x32xf32> to vector<1x32xf32>
    %129 = vector.shape_cast %126 : vector<1x32xf32> to vector<1x1x32xf32>
    tpu.vector_store %arg9[%c0_98, %c6_99, %c0_100], %129 {strides = array<i32>} : memref<1x8x32xf32, #tpu.memory_space<vmem>>, vector<1x1x32xf32>,
    %130 = arith.truncf %35 : vector<1x128xf32> to vector<1x128xbf16>
    %c7 = arith.constant 7 : index
    %c0_101 = arith.constant 0 : index
    %c0_102 = arith.constant 0 : index
    %131 = vector.load %arg6[%c7, %c0_101, %c0_102] : memref<8x128x32xbf16, #tpu.memory_space<vmem>>, vector<1x128x32xbf16>
    %132 = vector.shape_cast %131 : vector<1x128x32xbf16> to vector<128x32xbf16>
    %cst_103 = arith.constant dense<0.000000e+00> : vector<1x32xf32>
    %133 = tpu.matmul %130, %132, %cst_103 {dimension_numbers = #tpu.dot_dimension_numbers<[1], [0], [0], [1], [0, 0, 1, 1], [], []>} : vector<1x128xbf16>, vector<128x32xbf16>, vector<1x32xf32> -> vector<1x32xf32>
    %c7_104 = arith.constant 7 : index
    %c0_105 = arith.constant 0 : index
    %134 = vector.load %arg7[%c7_104, %c0_105] : memref<8x32xf32, #tpu.memory_space<vmem>>, vector<1x32xf32>
    %135 = arith.mulf %133, %134 : vector<1x32xf32>
    %c7_106 = arith.constant 7 : index
    %c0_107 = arith.constant 0 : index
    %136 = vector.load %arg8[%c7_106, %c0_107] : memref<8x32xf32, #tpu.memory_space<vmem>>, vector<1x32xf32>
    %137 = arith.addf %135, %136 : vector<1x32xf32>
    %cst_108 = arith.constant 0.000000e+00 : f32
    %138 = vector.broadcast %cst_108 : f32 to vector<1x32xf32>
    %139 = arith.maximumf %137, %138 : vector<1x32xf32>
    %c0_109 = arith.constant 0 : index
    %c7_110 = arith.constant 7 : index
    %c0_111 = arith.constant 0 : index
    %140 = vector.load %arg9[%c0_109, %c7_110, %c0_111] : memref<1x8x32xf32, #tpu.memory_space<vmem>>, vector<1x1x32xf32>
    %141 = vector.shape_cast %140 : vector<1x1x32xf32> to vector<1x32xf32>
    %142 = vector.shape_cast %139 : vector<1x32xf32> to vector<1x1x32xf32>
    tpu.vector_store %arg9[%c0_109, %c7_110, %c0_111], %142 {strides = array<i32>} : memref<1x8x32xf32, #tpu.memory_space<vmem>>, vector<1x1x32xf32>,
    return
  }
  func.func @transform_0(%arg0: i32) -> (i32, i32, i32) {
    %c0_i32 = arith.constant 0 : i32
    %c0_i32_0 = arith.constant 0 : i32
    %c0_i32_1 = arith.constant 0 : i32
    return %arg0, %c0_i32, %c0_i32_0 : i32, i32, i32
  }
  func.func @transform_1(%arg0: i32) -> (i32, i32) {
    %c0_i32 = arith.constant 0 : i32
    %c0_i32_0 = arith.constant 0 : i32
    %c0_i32_1 = arith.constant 0 : i32
    return %c0_i32, %c0_i32_0 : i32, i32
  }
  func.func @transform_2(%arg0: i32) -> (i32, i32) {
    %c0_i32 = arith.constant 0 : i32
    %c0_i32_0 = arith.constant 0 : i32
    %c0_i32_1 = arith.constant 0 : i32
    return %c0_i32, %c0_i32_0 : i32, i32
  }
  func.func @transform_3(%arg0: i32) -> (i32, i32) {
    %c0_i32 = arith.constant 0 : i32
    %c0_i32_0 = arith.constant 0 : i32
    %c0_i32_1 = arith.constant 0 : i32
    return %c0_i32, %c0_i32_0 : i32, i32
  }
  func.func @transform_4(%arg0: i32) -> (i32, i32) {
    %c0_i32 = arith.constant 0 : i32
    %c0_i32_0 = arith.constant 0 : i32
    %c0_i32_1 = arith.constant 0 : i32
    return %c0_i32, %c0_i32_0 : i32, i32
  }
  func.func @transform_5(%arg0: i32) -> (i32, i32, i32) {
    %c0_i32 = arith.constant 0 : i32
    %c0_i32_0 = arith.constant 0 : i32
    %c0_i32_1 = arith.constant 0 : i32
    %c0_i32_2 = arith.constant 0 : i32
    return %c0_i32, %c0_i32_0, %c0_i32_1 : i32, i32, i32
  }
  func.func @transform_6(%arg0: i32) -> (i32, i32) {
    %c0_i32 = arith.constant 0 : i32
    %c0_i32_0 = arith.constant 0 : i32
    %c0_i32_1 = arith.constant 0 : i32
    return %c0_i32, %c0_i32_0 : i32, i32
  }
  func.func @transform_7(%arg0: i32) -> (i32, i32) {
    %c0_i32 = arith.constant 0 : i32
    %c0_i32_0 = arith.constant 0 : i32
    %c0_i32_1 = arith.constant 0 : i32
    return %c0_i32, %c0_i32_0 : i32, i32
  }
  func.func @transform_8(%arg0: i32) -> (i32, i32, i32) {
    %c0_i32 = arith.constant 0 : i32
    %c0_i32_0 = arith.constant 0 : i32
    %c0_i32_1 = arith.constant 0 : i32
    return %arg0, %c0_i32, %c0_i32_0 : i32, i32, i32
  }
}

</mosaic_0001>

<llo_original>
// kernel: tpu_custom_call.1
$region0: #{tpu_custom_call.1}
  #allocation0 [shape = 'u32[]', space=smem, size = 0x4, offset = 0x4, fixed_abs, tag = 'smem constant byte address 0x4 - core index']
  #allocation1 [shape = 'u32[72,128]{1,0:T(1,128)}', space=vmem, size = 0x9000, scoped, tag = 'internal scratch']
  %s0 = inlined_call_operand.vmem [shape: bf16[2,48,4], index: 0, kind: input, shape index: {}]
  %s1 = inlined_call_operand.vmem [shape: bf16[4,128], index: 1, kind: input, shape index: {}]
  %s2 = inlined_call_operand.vmem [shape: bf16[128,128], index: 2, kind: input, shape index: {}]
  %s3 = inlined_call_operand.vmem [shape: bf16[128,128], index: 3, kind: input, shape index: {}]
  %s4 = inlined_call_operand.vmem [shape: bf16[128,128], index: 4, kind: input, shape index: {}]
  %s5 = inlined_call_operand.vmem [shape: bf16[8,128,32], index: 5, kind: input, shape index: {}]
  %s6 = inlined_call_operand.vmem [shape: f32[8,32], index: 6, kind: input, shape index: {}]
  %s7 = inlined_call_operand.vmem [shape: f32[8,32], index: 7, kind: input, shape index: {}]
  %s8 = inlined_call_operand.hbm [shape: f32[2,8,32], index: 8, kind: output, shape index: {}]
  %s9 = sld [smem:[#allocation0]]
  $region65: #{tpu_custom_call.1} parent=0
    _
  %s11 = ssub.s32 1, %s9
  %s12 = scalar_select 0, %s11, %s9
  $region1: #{tpu_custom_call.1} parent=0
    #allocation2 [shape = 'u8[8192]{0}', space=vmem, size = 0x2000, scoped, tag = 'output window, operand 0']
    #allocation3 [shape = 's32[2]{0}', space=sflag, size = 0x8, scoped, tag = 'scoped memory for tpu_custom_call.1']
    %13 = vsyncpa [#allocation3], 0
    %s14 = scalar_lea.sflag [#allocation3], 1
    %15 = vsyncpa %s14, 0
    loop: start=0, step=1, limit=4
    $region2: #{tpu_custom_call.1} parent=1 // loop_pre_header
      _
    $region3: #{tpu_custom_call.1} parent=1 // loop_header
      %s17 = sphi 0, %s21
      %p18 = scmp.ge.s32.totalorder %s17, 4
      %s27 = sphi 0, %s29
      %s30 = sphi 0, %s27
      %s31 = sphi 0, %s30
      %s47 = sphi 0, %s31
      %s51 = sphi 0, %s51
      %s53 = sphi 0, %s51
      %s54 = sphi 0, %s53
      %s68 = sphi 0, %s54
      %s72 = sphi 0, %s72
      %s74 = sphi 0, %s72
      %s75 = sphi 0, %s74
      %s89 = sphi 0, %s75
      %s93 = sphi 0, %s93
      %s95 = sphi 0, %s93
      %s96 = sphi 0, %s95
      %s110 = sphi 0, %s96
      %s114 = sphi 0, %s114
      %s116 = sphi 0, %s114
      %s117 = sphi 0, %s116
      %s131 = sphi 0, %s117
      %s135 = sphi 0, %s135
      %s137 = sphi 0, %s135
      %s138 = sphi 0, %s137
      %s152 = sphi 0, %s138
      %s156 = sphi 0, %s156
      %s158 = sphi 0, %s156
      %s159 = sphi 0, %s158
      %s173 = sphi 0, %s159
      %s177 = sphi 0, %s177
      %s179 = sphi 0, %s177
      %s180 = sphi 0, %s179
      %s194 = sphi 0, %s180
      %s200 = sphi 0, %s202
      %s203 = sphi 0, %s200
      %s204 = sphi 0, %s203
      %s220 = sphi 0, %s204
    $region4: #{tpu_custom_call.1} parent=1 // loop_header_branch
      %20 = sbr.rel (%p18) target = $region8
    $region5: #{tpu_custom_call.1} parent=1 // loop_body
      %s22 = ssub.s32 %s17, 1
      %s23 = ssub.s32 %s17, 2
      %s24 = sadd.s32 %s17, 1
      %s25 = ssub.s32 %s17, %s24
      %p26 = scmp.eq.s32.totalorder %s25, 0
      %s28 = sadd.s32 %s27, 1
      %s29 = scalar_select %p26, %s27, %s28
      %p32 = pneg %p26
      %p33 = scmp.eq.s32.totalorder %s17, 1
      %p34 = por %p32, %p33
      %p35 = scmp.ne.s32.totalorder %s27, %s30
      %p36 = scmp.eq.s32.totalorder %s17, 0
      %p37 = por %p35, %p36
      %p38 = scmp.ne.s32.totalorder %s27, %s30
      %p39 = scmp.eq.s32.totalorder %s22, 1
      %p40 = por %p38, %p39
      %p41 = scmp.ne.s32.totalorder %s30, %s31
      %p42 = scmp.eq.s32.totalorder %s22, 0
      %p43 = por %p41, %p42
      %p44 = scmp.ne.s32.totalorder %s30, %s31
      %p45 = scmp.eq.s32.totalorder %s23, 1
      %p46 = por %p44, %p45
      %p48 = scmp.ne.s32.totalorder %s31, %s47
      %p49 = scmp.eq.s32.totalorder %s23, 0
      %p50 = por %p48, %p49
      %s52 = sadd.s32 %s51, 1
      %p55 = scmp.eq.s32.totalorder %s17, 1
      %p56 = scmp.ne.s32.totalorder %s51, %s53
      %p57 = scmp.eq.s32.totalorder %s17, 0
      %p58 = por %p56, %p57
      %p59 = scmp.ne.s32.totalorder %s51, %s53
      %p60 = scmp.eq.s32.totalorder %s22, 1
      %p61 = por %p59, %p60
      %p62 = scmp.ne.s32.totalorder %s53, %s54
      %p63 = scmp.eq.s32.totalorder %s22, 0
      %p64 = por %p62, %p63
      %p65 = scmp.ne.s32.totalorder %s53, %s54
      %p66 = scmp.eq.s32.totalorder %s23, 1
      %p67 = por %p65, %p66
      %p69 = scmp.ne.s32.totalorder %s54, %s68
      %p70 = scmp.eq.s32.totalorder %s23, 0
      %p71 = por %p69, %p70
      %s73 = sadd.s32 %s72, 1
      %p76 = scmp.eq.s32.totalorder %s17, 1
      %p77 = scmp.ne.s32.totalorder %s72, %s74
      %p78 = scmp.eq.s32.totalorder %s17, 0
      %p79 = por %p77, %p78
      %p80 = scmp.ne.s32.totalorder %s72, %s74
      %p81 = scmp.eq.s32.totalorder %s22, 1
      %p82 = por %p80, %p81
      %p83 = scmp.ne.s32.totalorder %s74, %s75
      %p84 = scmp.eq.s32.totalorder %s22, 0
      %p85 = por %p83, %p84
      %p86 = scmp.ne.s32.totalorder %s74, %s75
      %p87 = scmp.eq.s32.totalorder %s23, 1
      %p88 = por %p86, %p87
      %p90 = scmp.ne.s32.totalorder %s75, %s89
      %p91 = scmp.eq.s32.totalorder %s23, 0
      %p92 = por %p90, %p91
      %s94 = sadd.s32 %s93, 1
      %p97 = scmp.eq.s32.totalorder %s17, 1
      %p98 = scmp.ne.s32.totalorder %s93, %s95
      %p99 = scmp.eq.s32.totalorder %s17, 0
      %p100 = por %p98, %p99
      %p101 = scmp.ne.s32.totalorder %s93, %s95
      %p102 = scmp.eq.s32.totalorder %s22, 1
      %p103 = por %p101, %p102
      %p104 = scmp.ne.s32.totalorder %s95, %s96
      %p105 = scmp.eq.s32.totalorder %s22, 0
      %p106 = por %p104, %p105
      %p107 = scmp.ne.s32.totalorder %s95, %s96
      %p108 = scmp.eq.s32.totalorder %s23, 1
      %p109 = por %p107, %p108
      %p111 = scmp.ne.s32.totalorder %s96, %s110
      %p112 = scmp.eq.s32.totalorder %s23, 0
      %p113 = por %p111, %p112
      %s115 = sadd.s32 %s114, 1
      %p118 = scmp.eq.s32.totalorder %s17, 1
      %p119 = scmp.ne.s32.totalorder %s114, %s116
      %p120 = scmp.eq.s32.totalorder %s17, 0
      %p121 = por %p119, %p120
      %p122 = scmp.ne.s32.totalorder %s114, %s116
      %p123 = scmp.eq.s32.totalorder %s22, 1
      %p124 = por %p122, %p123
      %p125 = scmp.ne.s32.totalorder %s116, %s117
      %p126 = scmp.eq.s32.totalorder %s22, 0
      %p127 = por %p125, %p126
      %p128 = scmp.ne.s32.totalorder %s116, %s117
      %p129 = scmp.eq.s32.totalorder %s23, 1
      %p130 = por %p128, %p129
      %p132 = scmp.ne.s32.totalorder %s117, %s131
      %p133 = scmp.eq.s32.totalorder %s23, 0
      %p134 = por %p132, %p133
      %s136 = sadd.s32 %s135, 1
      %p139 = scmp.eq.s32.totalorder %s17, 1
      %p140 = scmp.ne.s32.totalorder %s135, %s137
      %p141 = scmp.eq.s32.totalorder %s17, 0
      %p142 = por %p140, %p141
      %p143 = scmp.ne.s32.totalorder %s135, %s137
      %p144 = scmp.eq.s32.totalorder %s22, 1
      %p145 = por %p143, %p144
      %p146 = scmp.ne.s32.totalorder %s137, %s138
      %p147 = scmp.eq.s32.totalorder %s22, 0
      %p148 = por %p146, %p147
      %p149 = scmp.ne.s32.totalorder %s137, %s138
      %p150 = scmp.eq.s32.totalorder %s23, 1
      %p151 = por %p149, %p150
      %p153 = scmp.ne.s32.totalorder %s138, %s152
      %p154 = scmp.eq.s32.totalorder %s23, 0
      %p155 = por %p153, %p154
      %s157 = sadd.s32 %s156, 1
      %p160 = scmp.eq.s32.totalorder %s17, 1
      %p161 = scmp.ne.s32.totalorder %s156, %s158
      %p162 = scmp.eq.s32.totalorder %s17, 0
      %p163 = por %p161, %p162
      %p164 = scmp.ne.s32.totalorder %s156, %s158
      %p165 = scmp.eq.s32.totalorder %s22, 1
      %p166 = por %p164, %p165
      %p167 = scmp.ne.s32.totalorder %s158, %s159
      %p168 = scmp.eq.s32.totalorder %s22, 0
      %p169 = por %p167, %p168
      %p170 = scmp.ne.s32.totalorder %s158, %s159
      %p171 = scmp.eq.s32.totalorder %s23, 1
      %p172 = por %p170, %p171
      %p174 = scmp.ne.s32.totalorder %s159, %s173
      %p175 = scmp.eq.s32.totalorder %s23, 0
      %p176 = por %p174, %p175
      %s178 = sadd.s32 %s177, 1
      %p181 = scmp.eq.s32.totalorder %s17, 1
      %p182 = scmp.ne.s32.totalorder %s177, %s179
      %p183 = scmp.eq.s32.totalorder %s17, 0
      %p184 = por %p182, %p183
      %p185 = scmp.ne.s32.totalorder %s177, %s179
      %p186 = scmp.eq.s32.totalorder %s22, 1
      %p187 = por %p185, %p186
      %p188 = scmp.ne.s32.totalorder %s179, %s180
      %p189 = scmp.eq.s32.totalorder %s22, 0
      %p190 = por %p188, %p189
      %p191 = scmp.ne.s32.totalorder %s179, %s180
      %p192 = scmp.eq.s32.totalorder %s23, 1
      %p193 = por %p191, %p192
      %p195 = scmp.ne.s32.totalorder %s180, %s194
      %p196 = scmp.eq.s32.totalorder %s23, 0
      %p197 = por %p195, %p196
      %s198 = ssub.s32 %s17, %s24
      %p199 = scmp.eq.s32.totalorder %s198, 0
      %s201 = sadd.s32 %s200, 1
      %s202 = scalar_select %p199, %s200, %s201
      %p205 = pneg %p199
      %p206 = scmp.eq.s32.totalorder %s17, 1
      %p207 = por %p205, %p206
      %p208 = scmp.ne.s32.totalorder %s200, %s203
      %p209 = scmp.eq.s32.totalorder %s17, 0
      %p210 = por %p208, %p209
      %p211 = scmp.ne.s32.totalorder %s200, %s203
      %p212 = scmp.eq.s32.totalorder %s22, 1
      %p213 = por %p211, %p212
      %p214 = scmp.ne.s32.totalorder %s203, %s204
      %p215 = scmp.eq.s32.totalorder %s22, 0
      %p216 = por %p214, %p215
      %p217 = scmp.ne.s32.totalorder %s203, %s204
      %p218 = scmp.eq.s32.totalorder %s23, 1
      %p219 = por %p217, %p218
      %p221 = scmp.ne.s32.totalorder %s204, %s220
      %p222 = scmp.eq.s32.totalorder %s23, 0
      %p223 = por %p221, %p222
      %p224 = scmp.le.s32.totalorder 1, %s17
      %p225 = scmp.lt.s32.totalorder %s17, 3
      %p226 = pnand %p224, %p225
      %p227 = pneg %p226
      // Predicated region
      $region9: #{tpu_custom_call.1} parent=5 // pred_check
        _
      $region10: #{tpu_custom_call.1} parent=5 // pred_check_branch
        %229 = sbr.rel (%p226) target = $region12
      $region11: #{tpu_custom_call.1} parent=5 // pred_region
        %s230 = ssub.s32 %s17, 1
        // Predicated region
        $region13: #{tpu_custom_call.1} parent=11 // pred_check
          %p231 = pneg %p64
        $region14: #{tpu_custom_call.1} parent=11 // pred_check_branch
          %233 = sbr.rel (%p231) target = $region16
        $region15: #{tpu_custom_call.1} parent=11 // pred_region
          _
        $region16: #{tpu_custom_call.1} parent=11 // pred_fallthru
          _
        // Predicated region
        $region17: #{tpu_custom_call.1} parent=11 // pred_check
          %p234 = pneg %p85
        $region18: #{tpu_custom_call.1} parent=11 // pred_check_branch
          %236 = sbr.rel (%p234) target = $region20
        $region19: #{tpu_custom_call.1} parent=11 // pred_region
          _
        $region20: #{tpu_custom_call.1} parent=11 // pred_fallthru
          _
        // Predicated region
        $region21: #{tpu_custom_call.1} parent=11 // pred_check
          %p237 = pneg %p106
        $region22: #{tpu_custom_call.1} parent=11 // pred_check_branch
          %239 = sbr.rel (%p237) target = $region24
        $region23: #{tpu_custom_call.1} parent=11 // pred_region
          _
        $region24: #{tpu_custom_call.1} parent=11 // pred_fallthru
          _
        // Predicated region
        $region25: #{tpu_custom_call.1} parent=11 // pred_check
          %p240 = pneg %p127
        $region26: #{tpu_custom_call.1} parent=11 // pred_check_branch
          %242 = sbr.rel (%p240) target = $region28
        $region27: #{tpu_custom_call.1} parent=11 // pred_region
          _
        $region28: #{tpu_custom_call.1} parent=11 // pred_fallthru
          _
        // Predicated region
        $region29: #{tpu_custom_call.1} parent=11 // pred_check
          %p243 = pneg %p148
        $region30: #{tpu_custom_call.1} parent=11 // pred_check_branch
          %245 = sbr.rel (%p243) target = $region32
        $region31: #{tpu_custom_call.1} parent=11 // pred_region
          _
        $region32: #{tpu_custom_call.1} parent=11 // pred_fallthru
          _
        // Predicated region
        $region33: #{tpu_custom_call.1} parent=11 // pred_check
          %p246 = pneg %p169
        $region34: #{tpu_custom_call.1} parent=11 // pred_check_branch
          %248 = sbr.rel (%p246) target = $region36
        $region35: #{tpu_custom_call.1} parent=11 // pred_region
          _
        $region36: #{tpu_custom_call.1} parent=11 // pred_fallthru
          _
        // Predicated region
        $region37: #{tpu_custom_call.1} parent=11 // pred_check
          %p249 = pneg %p190
        $region38: #{tpu_custom_call.1} parent=11 // pred_check_branch
          %251 = sbr.rel (%p249) target = $region40
        $region39: #{tpu_custom_call.1} parent=11 // pred_region
          _
        $region40: #{tpu_custom_call.1} parent=11 // pred_fallthru
          _
      $region12: #{tpu_custom_call.1} parent=5 // pred_fallthru
        _
      %p252 = scmp.lt.s32.totalorder %s17, 2
      // Predicated region
      $region41: #{tpu_custom_call.1} parent=5 // pred_check
        %p253 = pneg %p252
      $region42: #{tpu_custom_call.1} parent=5 // pred_check_branch
        %255 = sbr.rel (%p253) target = $region44
      $region43: #{tpu_custom_call.1} parent=5 // pred_region
        // Predicated region
        $region45: #{tpu_custom_call.1} parent=43 // pred_check
          %p256 = pneg %p37
        $region46: #{tpu_custom_call.1} parent=43 // pred_check_branch
          %258 = sbr.rel (%p256) target = $region48
        $region47: #{tpu_custom_call.1} parent=43 // pred_region
          %p259 = scmp.lt.s32.totalorder %s17, 1
          %s260 = scalar_select %p259, %s17, 1
          %s261 = smul.addr %s260, 6
          %s262 = smul.addr %s261, 4
          %s263 = scalar_lea.vmem %s0, %s262
        $region48: #{tpu_custom_call.1} parent=43 // pred_fallthru
          _
      $region44: #{tpu_custom_call.1} parent=5 // pred_fallthru
        _
      %p264 = scmp.le.s32.totalorder 1, %s17
      %p265 = scmp.lt.s32.totalorder %s17, 3
      %p266 = pnand %p264, %p265
      %p267 = pneg %p266
      // Predicated region
      $region49: #{tpu_custom_call.1} parent=5 // pred_check
        _
      $region50: #{tpu_custom_call.1} parent=5 // pred_check_branch
        %269 = sbr.rel (%p266) target = $region52
      $region51: #{tpu_custom_call.1} parent=5 // pred_region
        %s270 = ssub.s32 %s17, 1
        %p271 = scmp.lt.s32.totalorder %s22, 1
        %s272 = scalar_select %p271, %s22, 1
        %s273 = smul.addr %s272, 6
        %s274 = smul.addr %s273, 4
        %s275 = scalar_lea.vmem %s0, %s274
        %p276 = pneg %p43
        %p277 = pneg %p40
        %p278 = pneg %p64
        %p279 = pneg %p61
        %p280 = pneg %p85
        %p281 = pneg %p82
        %p282 = pneg %p106
        %p283 = pneg %p103
        %p284 = pneg %p127
        %p285 = pneg %p124
        %p286 = pneg %p148
        %p287 = pneg %p145
        %p288 = pneg %p169
        %p289 = pneg %p166
        %p290 = pneg %p190
        %p291 = pneg %p187
        %p292 = pneg %p216
        %p293 = pneg %p213
        %s294 = sand.u32 %s203, 1
        %s295 = scalar_lea.sflag [#allocation3], %s294
        %s296 = sand.u32 %s203, 1
        %s297 = smul.addr %s296, 8
        %s298 = scalar_lea.vmem [#allocation2], %s297
        %p299 = scmp.lt.s32.totalorder %s22, 1
        %s300 = scalar_select %p299, %s22, 1
        %s301 = smul.addr %s300, 6
        %s302 = smul.addr %s301, 4
        %s303 = scalar_lea.vmem %s0, %s302
        %v305 = vld [vmem:[%s303] sm:$0xf]
        %v306 = vld [vmem:[%s303 + $0x4] sm:$0xf]
        %v307 = vld [vmem:[%s303 + $0x8] sm:$0xf]
        %v308 = vld [vmem:[%s303 + $0xc] sm:$0xf]
        %v309 = vld [vmem:[%s303 + $0x10] sm:$0xf]
        %v310 = vld [vmem:[%s303 + $0x14] sm:$0xf]
        %v311 = vld [vmem:[%s1] sm:$0x3]
        %v318 = vunpack.c.l.b16 %v305
        %v319 = vunpack.c.l.b16 %v306
        %v320 = vunpack.c.l.b16 %v307
        %v321 = vunpack.c.l.b16 %v308
        %v322 = vunpack.c.l.b16 %v309
        %v323 = vunpack.c.l.b16 %v310
        %v324 = vpack.c.b16 %v319, %v318
        %v325 = vpack.c.b16 %v321, %v320
        %v326 = vpack.c.b16 %v323, %v322
        %vm327 = vcmask 31744
        %v329 = vsel %vm327, %v324, 0
        %v332 = vsel %vm327, %v325, 0
        %v335 = vsel %vm327, %v326, 0
        %vm337 = vcmask 1041408
        %v339 = vsel %vm337, %v311, 0
        %341 = vmatpush.bf16.msra.mxu0 0
        %342 = vmatpush.bf16.msra.mxu0 0
        %343 = vmatpush.bf16.msra.mxu0 0
        %344 = vmatpush.bf16.msra.mxu0 0
        %345 = vmatpush.bf16.msra.mxu0 0
        %346 = vmatpush.bf16.msra.mxu0 0
        %347 = vmatpush.bf16.msra.mxu0 0
        %348 = vmatpush.bf16.msra.mxu0 %v339
        %349 = vmatmul.bf16.gmra.mxu0 %v329
        %v350 = vpop.f32.mrf.mxu0
        %v351 = vadd.f32 0.0, %v350
        %v352 = vpop.f32.mrf.mxu0
        %v353 = vadd.f32 0.0, %v352
        %354 = vmatmul.bf16.gmra.mxu0 %v332
        %v355 = vpop.f32.mrf.mxu0
        %v356 = vadd.f32 0.0, %v355
        %v357 = vpop.f32.mrf.mxu0
        %v358 = vadd.f32 0.0, %v357
        %359 = vmatmul.bf16.gmra.mxu0 %v335
        %v360 = vpop.f32.mrf.mxu0
        %v361 = vadd.f32 0.0, %v360
        %v362 = vpop.f32.mrf.mxu0
        %v363 = vadd.f32 0.0, %v362
        %364 = vdwg.mxu0
        %v365 = vmax.f32 %v351, 0.0
        %v366 = vmax.f32 %v353, 0.0
        %v367 = vmax.f32 %v356, 0.0
        %v368 = vmax.f32 %v358, 0.0
        %v369 = vmax.f32 %v361, 0.0
        %v370 = vmax.f32 %v363, 0.0
        %v371 = vpack.c.bf16 %v366, %v365
        %v372 = vpack.c.bf16 %v368, %v367
        %v373 = vpack.c.bf16 %v370, %v369
        %v374 = vld [vmem:[%s2] sm:$0xf]
        %v375 = vld [vmem:[%s2 + $0x4] sm:$0xf]
        %v376 = vld [vmem:[%s2 + $0x8] sm:$0xf]
        %v377 = vld [vmem:[%s2 + $0xc] sm:$0xf]
        %v378 = vld [vmem:[%s2 + $0x10] sm:$0xf]
        %v379 = vld [vmem:[%s2 + $0x14] sm:$0xf]
        %v380 = vld [vmem:[%s2 + $0x18] sm:$0xf]
        %v381 = vld [vmem:[%s2 + $0x1c] sm:$0xf]
        %v382 = vld [vmem:[%s2 + $0x20] sm:$0xf]
        %v383 = vld [vmem:[%s2 + $0x24] sm:$0xf]
        %v384 = vld [vmem:[%s2 + $0x28] sm:$0xf]
        %v385 = vld [vmem:[%s2 + $0x2c] sm:$0xf]
        %v386 = vld [vmem:[%s2 + $0x30] sm:$0xf]
        %v387 = vld [vmem:[%s2 + $0x34] sm:$0xf]
        %v388 = vld [vmem:[%s2 + $0x38] sm:$0xf]
        %v389 = vld [vmem:[%s2 + $0x3c] sm:$0xf]
        %v406 = vunpack.c.l.b16 %v374
        %v407 = vunpack.c.l.b16 %v375
        %v408 = vunpack.c.l.b16 %v376
        %v409 = vunpack.c.l.b16 %v377
        %v410 = vunpack.c.l.b16 %v378
        %v411 = vunpack.c.l.b16 %v379
        %v412 = vunpack.c.l.b16 %v380
        %v413 = vunpack.c.l.b16 %v381
        %v414 = vunpack.c.l.b16 %v382
        %v415 = vunpack.c.l.b16 %v383
        %v416 = vunpack.c.l.b16 %v384
        %v417 = vunpack.c.l.b16 %v385
        %v418 = vunpack.c.l.b16 %v386
        %v419 = vunpack.c.l.b16 %v387
        %v420 = vunpack.c.l.b16 %v388
        %v421 = vunpack.c.l.b16 %v389
        %v422 = vpack.c.b16 %v407, %v406
        %v423 = vpack.c.b16 %v409, %v408
        %v424 = vpack.c.b16 %v411, %v410
        %v425 = vpack.c.b16 %v413, %v412
        %v426 = vpack.c.b16 %v415, %v414
        %v427 = vpack.c.b16 %v417, %v416
        %v428 = vpack.c.b16 %v419, %v418
        %v429 = vpack.c.b16 %v421, %v420
        %438 = vmatpush.bf16.msra.mxu0 %v429
        %439 = vmatpush.bf16.msra.mxu0 %v428
        %440 = vmatpush.bf16.msra.mxu0 %v427
        %441 = vmatpush.bf16.msra.mxu0 %v426
        %442 = vmatpush.bf16.msra.mxu0 %v425
        %443 = vmatpush.bf16.msra.mxu0 %v424
        %444 = vmatpush.bf16.msra.mxu0 %v423
        %445 = vmatpush.bf16.msra.mxu0 %v422
        %446 = vmatmul.bf16.gmra.mxu0 %v371
        %v447 = vpop.f32.mrf.mxu0
        %v448 = vadd.f32 0.0, %v447
        %v449 = vpop.f32.mrf.mxu0
        %v450 = vadd.f32 0.0, %v449
        %451 = vmatmul.bf16.gmra.mxu0 %v372
        %v452 = vpop.f32.mrf.mxu0
        %v453 = vadd.f32 0.0, %v452
        %v454 = vpop.f32.mrf.mxu0
        %v455 = vadd.f32 0.0, %v454
        %456 = vmatmul.bf16.gmra.mxu0 %v373
        %v457 = vpop.f32.mrf.mxu0
        %v458 = vadd.f32 0.0, %v457
        %v459 = vpop.f32.mrf.mxu0
        %v460 = vadd.f32 0.0, %v459
        %461 = vdwg.mxu0
        %v462 = vmax.f32 %v448, 0.0
        %v463 = vmax.f32 %v450, 0.0
        %v464 = vmax.f32 %v453, 0.0
        %v465 = vmax.f32 %v455, 0.0
        %v466 = vmax.f32 %v458, 0.0
        %v467 = vmax.f32 %v460, 0.0
        %v468 = vld [vmem:[%s3] sm:$0xf]
        %v469 = vld [vmem:[%s3 + $0x4] sm:$0xf]
        %v470 = vld [vmem:[%s3 + $0x8] sm:$0xf]
        %v471 = vld [vmem:[%s3 + $0xc] sm:$0xf]
        %v472 = vld [vmem:[%s3 + $0x10] sm:$0xf]
        %v473 = vld [vmem:[%s3 + $0x14] sm:$0xf]
        %v474 = vld [vmem:[%s3 + $0x18] sm:$0xf]
        %v475 = vld [vmem:[%s3 + $0x1c] sm:$0xf]
        %v476 = vld [vmem:[%s3 + $0x20] sm:$0xf]
        %v477 = vld [vmem:[%s3 + $0x24] sm:$0xf]
        %v478 = vld [vmem:[%s3 + $0x28] sm:$0xf]
        %v479 = vld [vmem:[%s3 + $0x2c] sm:$0xf]
        %v480 = vld [vmem:[%s3 + $0x30] sm:$0xf]
        %v481 = vld [vmem:[%s3 + $0x34] sm:$0xf]
        %v482 = vld [vmem:[%s3 + $0x38] sm:$0xf]
        %v483 = vld [vmem:[%s3 + $0x3c] sm:$0xf]
        %v500 = vunpack.c.l.b16 %v468
        %v501 = vunpack.c.l.b16 %v469
        %v502 = vunpack.c.l.b16 %v470
        %v503 = vunpack.c.l.b16 %v471
        %v504 = vunpack.c.l.b16 %v472
        %v505 = vunpack.c.l.b16 %v473
        %v506 = vunpack.c.l.b16 %v474
        %v507 = vunpack.c.l.b16 %v475
        %v508 = vunpack.c.l.b16 %v476
        %v509 = vunpack.c.l.b16 %v477
        %v510 = vunpack.c.l.b16 %v478
        %v511 = vunpack.c.l.b16 %v479
        %v512 = vunpack.c.l.b16 %v480
        %v513 = vunpack.c.l.b16 %v481
        %v514 = vunpack.c.l.b16 %v482
        %v515 = vunpack.c.l.b16 %v483
        %v516 = vpack.c.b16 %v501, %v500
        %v517 = vpack.c.b16 %v503, %v502
        %v518 = vpack.c.b16 %v505, %v504
        %v519 = vpack.c.b16 %v507, %v506
        %v520 = vpack.c.b16 %v509, %v508
        %v521 = vpack.c.b16 %v511, %v510
        %v522 = vpack.c.b16 %v513, %v512
        %v523 = vpack.c.b16 %v515, %v514
        %532 = vmatpush.bf16.msra.mxu0 %v523
        %533 = vmatpush.bf16.msra.mxu0 %v522
        %534 = vmatpush.bf16.msra.mxu0 %v521
        %535 = vmatpush.bf16.msra.mxu0 %v520
        %536 = vmatpush.bf16.msra.mxu0 %v519
        %537 = vmatpush.bf16.msra.mxu0 %v518
        %538 = vmatpush.bf16.msra.mxu0 %v517
        %539 = vmatpush.bf16.msra.mxu0 %v516
        %540 = vmatmul.bf16.gmra.mxu0 %v371
        %v541 = vpop.f32.mrf.mxu0
        %v542 = vadd.f32 0.0, %v541
        %v543 = vpop.f32.mrf.mxu0
        %v544 = vadd.f32 0.0, %v543
        %545 = vmatmul.bf16.gmra.mxu0 %v372
        %v546 = vpop.f32.mrf.mxu0
        %v547 = vadd.f32 0.0, %v546
        %v548 = vpop.f32.mrf.mxu0
        %v549 = vadd.f32 0.0, %v548
        %550 = vmatmul.bf16.gmra.mxu0 %v373
        %v551 = vpop.f32.mrf.mxu0
        %v552 = vadd.f32 0.0, %v551
        %v553 = vpop.f32.mrf.mxu0
        %v554 = vadd.f32 0.0, %v553
        %555 = vdwg.mxu0
        %v556 = vmax.f32 %v542, 0.0
        %v557 = vmax.f32 %v544, 0.0
        %v558 = vmax.f32 %v547, 0.0
        %v559 = vmax.f32 %v549, 0.0
        %v560 = vmax.f32 %v552, 0.0
        %v561 = vmax.f32 %v554, 0.0
        %v562 = vld [vmem:[%s4] sm:$0xf]
        %v563 = vld [vmem:[%s4 + $0x4] sm:$0xf]
        %v564 = vld [vmem:[%s4 + $0x8] sm:$0xf]
        %v565 = vld [vmem:[%s4 + $0xc] sm:$0xf]
        %v566 = vld [vmem:[%s4 + $0x10] sm:$0xf]
        %v567 = vld [vmem:[%s4 + $0x14] sm:$0xf]
        %v568 = vld [vmem:[%s4 + $0x18] sm:$0xf]
        %v569 = vld [vmem:[%s4 + $0x1c] sm:$0xf]
        %v570 = vld [vmem:[%s4 + $0x20] sm:$0xf]
        %v571 = vld [vmem:[%s4 + $0x24] sm:$0xf]
        %v572 = vld [vmem:[%s4 + $0x28] sm:$0xf]
        %v573 = vld [vmem:[%s4 + $0x2c] sm:$0xf]
        %v574 = vld [vmem:[%s4 + $0x30] sm:$0xf]
        %v575 = vld [vmem:[%s4 + $0x34] sm:$0xf]
        %v576 = vld [vmem:[%s4 + $0x38] sm:$0xf]
        %v577 = vld [vmem:[%s4 + $0x3c] sm:$0xf]
        %v594 = vunpack.c.l.b16 %v562
        %v595 = vunpack.c.l.b16 %v563
        %v596 = vunpack.c.l.b16 %v564
        %v597 = vunpack.c.l.b16 %v565
        %v598 = vunpack.c.l.b16 %v566
        %v599 = vunpack.c.l.b16 %v567
        %v600 = vunpack.c.l.b16 %v568
        %v601 = vunpack.c.l.b16 %v569
        %v602 = vunpack.c.l.b16 %v570
        %v603 = vunpack.c.l.b16 %v571
        %v604 = vunpack.c.l.b16 %v572
        %v605 = vunpack.c.l.b16 %v573
        %v606 = vunpack.c.l.b16 %v574
        %v607 = vunpack.c.l.b16 %v575
        %v608 = vunpack.c.l.b16 %v576
        %v609 = vunpack.c.l.b16 %v577
        %v610 = vpack.c.b16 %v595, %v594
        %v611 = vpack.c.b16 %v597, %v596
        %v612 = vpack.c.b16 %v599, %v598
        %v613 = vpack.c.b16 %v601, %v600
        %v614 = vpack.c.b16 %v603, %v602
        %v615 = vpack.c.b16 %v605, %v604
        %v616 = vpack.c.b16 %v607, %v606
        %v617 = vpack.c.b16 %v609, %v608
        %626 = vmatpush.bf16.msra.mxu0 %v617
        %627 = vmatpush.bf16.msra.mxu0 %v616
        %628 = vmatpush.bf16.msra.mxu0 %v615
        %629 = vmatpush.bf16.msra.mxu0 %v614
        %630 = vmatpush.bf16.msra.mxu0 %v613
        %631 = vmatpush.bf16.msra.mxu0 %v612
        %632 = vmatpush.bf16.msra.mxu0 %v611
        %633 = vmatpush.bf16.msra.mxu0 %v610
        %634 = vmatmul.bf16.gmra.mxu0 %v371
        %v635 = vpop.f32.mrf.mxu0
        %v636 = vadd.f32 0.0, %v635
        %v637 = vpop.f32.mrf.mxu0
        %v638 = vadd.f32 0.0, %v637
        %639 = vmatmul.bf16.gmra.mxu0 %v372
        %v640 = vpop.f32.mrf.mxu0
        %v641 = vadd.f32 0.0, %v640
        %v642 = vpop.f32.mrf.mxu0
        %v643 = vadd.f32 0.0, %v642
        %644 = vmatmul.bf16.gmra.mxu0 %v373
        %v645 = vpop.f32.mrf.mxu0
        %v646 = vadd.f32 0.0, %v645
        %v647 = vpop.f32.mrf.mxu0
        %v648 = vadd.f32 0.0, %v647
        %649 = vdwg.mxu0
        %v650 = vmax.f32 %v636, 0.0
        %v651 = vmax.f32 %v638, 0.0
        %v652 = vmax.f32 %v641, 0.0
        %v653 = vmax.f32 %v643, 0.0
        %v654 = vmax.f32 %v646, 0.0
        %v655 = vmax.f32 %v648, 0.0
        %v656 = vmax.f32 %v462, %v466
        %v657 = vmax.f32 %v463, %v467
        %v658 = vmax.f32 %v656, %v657
        %v659 = vmax.f32 %v464, %v465
        %v660 = vmax.f32 %v658, %v659
        %v661 = vrot.slane %v660, 4
        %v662 = vmax.f32 %v660, %v661
        %v663 = vrot.slane %v662, 2
        %v664 = vmax.f32 %v662, %v663
        %v665 = vrot.slane %v664, 1
        %v666 = vmax.f32 %v664, %v665
        %v667 = vmax.f32 %v556, %v557
        %v668 = vmax.f32 %v667, %v558
        %v669 = vrot.slane %v668, 4
        %v670 = vmax.f32 %v668, %v669
        %v671 = vrot.slane %v670, 2
        %v672 = vmax.f32 %v670, %v671
        %v673 = vrot.slane %v672, 1
        %v674 = vmax.f32 %v672, %v673
        %v675 = vmax.f32 %v559, %v560
        %v676 = vmax.f32 %v675, %v561
        %v677 = vrot.slane %v676, 4
        %v678 = vmax.f32 %v676, %v677
        %v679 = vrot.slane %v678, 2
        %v680 = vmax.f32 %v678, %v679
        %v681 = vrot.slane %v680, 1
        %v682 = vmax.f32 %v680, %v681
        %v683 = vmax.f32 %v650, %v651
        %v684 = vrot.slane %v683, 4
        %v685 = vmax.f32 %v683, %v684
        %v686 = vrot.slane %v685, 2
        %v687 = vmax.f32 %v685, %v686
        %v688 = vrot.slane %v687, 1
        %v689 = vmax.f32 %v687, %v688
        %v690 = vmax.f32 %v652, %v653
        %v691 = vrot.slane %v690, 4
        %v692 = vmax.f32 %v690, %v691
        %v693 = vrot.slane %v692, 2
        %v694 = vmax.f32 %v692, %v693
        %v695 = vrot.slane %v694, 1
        %v696 = vmax.f32 %v694, %v695
        %v697 = vmax.f32 %v654, %v655
        %v698 = vrot.slane %v697, 4
        %v699 = vmax.f32 %v697, %v698
        %v700 = vrot.slane %v699, 2
        %v701 = vmax.f32 %v699, %v700
        %v702 = vrot.slane %v701, 1
        %v703 = vmax.f32 %v701, %v702
        %v704 = vmax.f32 %v674, %v682
        %v705 = vmax.f32 %v689, %v696
        %v706 = vmax.f32 %v705, %v703
        %v707 = vpack.c.bf16 %v666, %v666
        %v708 = vld [vmem:[%s5] sm:$0xf]
        %v709 = vld [vmem:[%s5 + $0x4] sm:$0xf]
        %v710 = vld [vmem:[%s5 + $0x8] sm:$0xf]
        %v711 = vld [vmem:[%s5 + $0xc] sm:$0xf]
        %v712 = vld [vmem:[%s5 + $0x10] sm:$0xf]
        %v713 = vld [vmem:[%s5 + $0x14] sm:$0xf]
        %v714 = vld [vmem:[%s5 + $0x18] sm:$0xf]
        %v715 = vld [vmem:[%s5 + $0x1c] sm:$0xf]
        %v716 = vld [vmem:[%s5 + $0x20] sm:$0xf]
        %v717 = vld [vmem:[%s5 + $0x24] sm:$0xf]
        %v718 = vld [vmem:[%s5 + $0x28] sm:$0xf]
        %v719 = vld [vmem:[%s5 + $0x2c] sm:$0xf]
        %v720 = vld [vmem:[%s5 + $0x30] sm:$0xf]
        %v721 = vld [vmem:[%s5 + $0x34] sm:$0xf]
        %v722 = vld [vmem:[%s5 + $0x38] sm:$0xf]
        %v723 = vld [vmem:[%s5 + $0x3c] sm:$0xf]
        %v740 = vunpack.c.l.b16 %v708
        %v741 = vunpack.c.l.b16 %v709
        %v742 = vunpack.c.l.b16 %v710
        %v743 = vunpack.c.l.b16 %v711
        %v744 = vunpack.c.l.b16 %v712
        %v745 = vunpack.c.l.b16 %v713
        %v746 = vunpack.c.l.b16 %v714
        %v747 = vunpack.c.l.b16 %v715
        %v748 = vunpack.c.l.b16 %v716
        %v749 = vunpack.c.l.b16 %v717
        %v750 = vunpack.c.l.b16 %v718
        %v751 = vunpack.c.l.b16 %v719
        %v752 = vunpack.c.l.b16 %v720
        %v753 = vunpack.c.l.b16 %v721
        %v754 = vunpack.c.l.b16 %v722
        %v755 = vunpack.c.l.b16 %v723
        %v756 = vpack.c.b16 %v741, %v740
        %v757 = vpack.c.b16 %v743, %v742
        %v758 = vpack.c.b16 %v745, %v744
        %v759 = vpack.c.b16 %v747, %v746
        %v760 = vpack.c.b16 %v749, %v748
        %v761 = vpack.c.b16 %v751, %v750
        %v762 = vpack.c.b16 %v753, %v752
        %v763 = vpack.c.b16 %v755, %v754
        %772 = vmatpush.bf16.msra.mxu0 %v763
        %773 = vmatpush.bf16.msra.mxu0 %v762
        %774 = vmatpush.bf16.msra.mxu0 %v761
        %775 = vmatpush.bf16.msra.mxu0 %v760
        %776 = vmatpush.bf16.msra.mxu0 %v759
        %777 = vmatpush.bf16.msra.mxu0 %v758
        %778 = vmatpush.bf16.msra.mxu0 %v757
        %779 = vmatpush.bf16.msra.mxu0 %v756
        %780 = vmatmul.bf16.gmra.mxu0 %v707
        %v781 = vpop.f32.mrf.mxu0
        %v782 = vadd.f32 0.0, %v781
        %v783 = vpop.f32.mrf.mxu0
        %784 = vdwg.mxu0
        %v785 = vld [vmem:[%s6] sm:$0x1]
        %v786 = vmul.f32 %v782, %v785
        %v787 = vld [vmem:[%s7] sm:$0x1]
        %v788 = vadd.f32 %v786, %v787
        %v789 = vmax.f32 %v788, 0.0
        %vm790 = vcmask 253952
        %791 = vst.msk [vmem:[%s298] sm:$0x1] %vm790, %v789
        %v792 = vpack.c.bf16 %v704, %v704
        %s793 = scalar_lea.vmem %s5, 64
        %v794 = vld [vmem:[%s793] sm:$0xf]
        %v795 = vld [vmem:[%s793 + $0x4] sm:$0xf]
        %v796 = vld [vmem:[%s793 + $0x8] sm:$0xf]
        %v797 = vld [vmem:[%s793 + $0xc] sm:$0xf]
        %v798 = vld [vmem:[%s793 + $0x10] sm:$0xf]
        %v799 = vld [vmem:[%s793 + $0x14] sm:$0xf]
        %v800 = vld [vmem:[%s793 + $0x18] sm:$0xf]
        %v801 = vld [vmem:[%s793 + $0x1c] sm:$0xf]
        %v802 = vld [vmem:[%s793 + $0x20] sm:$0xf]
        %v803 = vld [vmem:[%s793 + $0x24] sm:$0xf]
        %v804 = vld [vmem:[%s793 + $0x28] sm:$0xf]
        %v805 = vld [vmem:[%s793 + $0x2c] sm:$0xf]
        %v806 = vld [vmem:[%s793 + $0x30] sm:$0xf]
        %v807 = vld [vmem:[%s793 + $0x34] sm:$0xf]
        %v808 = vld [vmem:[%s793 + $0x38] sm:$0xf]
        %v809 = vld [vmem:[%s793 + $0x3c] sm:$0xf]
        %v826 = vunpack.c.l.b16 %v794
        %v827 = vunpack.c.l.b16 %v795
        %v828 = vunpack.c.l.b16 %v796
        %v829 = vunpack.c.l.b16 %v797
        %v830 = vunpack.c.l.b16 %v798
        %v831 = vunpack.c.l.b16 %v799
        %v832 = vunpack.c.l.b16 %v800
        %v833 = vunpack.c.l.b16 %v801
        %v834 = vunpack.c.l.b16 %v802
        %v835 = vunpack.c.l.b16 %v803
        %v836 = vunpack.c.l.b16 %v804
        %v837 = vunpack.c.l.b16 %v805
        %v838 = vunpack.c.l.b16 %v806
        %v839 = vunpack.c.l.b16 %v807
        %v840 = vunpack.c.l.b16 %v808
        %v841 = vunpack.c.l.b16 %v809
        %v842 = vpack.c.b16 %v827, %v826
        %v843 = vpack.c.b16 %v829, %v828
        %v844 = vpack.c.b16 %v831, %v830
        %v845 = vpack.c.b16 %v833, %v832
        %v846 = vpack.c.b16 %v835, %v834
        %v847 = vpack.c.b16 %v837, %v836
        %v848 = vpack.c.b16 %v839, %v838
        %v849 = vpack.c.b16 %v841, %v840
        %858 = vmatpush.bf16.msra.mxu0 %v849
        %859 = vmatpush.bf16.msra.mxu0 %v848
        %860 = vmatpush.bf16.msra.mxu0 %v847
        %861 = vmatpush.bf16.msra.mxu0 %v846
        %862 = vmatpush.bf16.msra.mxu0 %v845
        %863 = vmatpush.bf16.msra.mxu0 %v844
        %864 = vmatpush.bf16.msra.mxu0 %v843
        %865 = vmatpush.bf16.msra.mxu0 %v842
        %866 = vmatmul.bf16.gmra.mxu0 %v792
        %v867 = vpop.f32.mrf.mxu0
        %v868 = vadd.f32 0.0, %v867
        %v869 = vpop.f32.mrf.mxu0
        %870 = vdwg.mxu0
        %v871 = vld [vmem:[%s6 + $0x1] sm:$0x1]
        %v872 = vmul.f32 %v868, %v871
        %v873 = vld [vmem:[%s7 + $0x1] sm:$0x1]
        %v874 = vadd.f32 %v872, %v873
        %v875 = vmax.f32 %v874, 0.0
        %876 = vst.msk [vmem:[%s298 + $0x1] sm:$0x1] %vm790, %v875
        %v877 = vpack.c.bf16 %v706, %v706
        %s878 = scalar_lea.vmem %s5, 128
        %v879 = vld [vmem:[%s878] sm:$0xf]
        %v880 = vld [vmem:[%s878 + $0x4] sm:$0xf]
        %v881 = vld [vmem:[%s878 + $0x8] sm:$0xf]
        %v882 = vld [vmem:[%s878 + $0xc] sm:$0xf]
        %v883 = vld [vmem:[%s878 + $0x10] sm:$0xf]
        %v884 = vld [vmem:[%s878 + $0x14] sm:$0xf]
        %v885 = vld [vmem:[%s878 + $0x18] sm:$0xf]
        %v886 = vld [vmem:[%s878 + $0x1c] sm:$0xf]
        %v887 = vld [vmem:[%s878 + $0x20] sm:$0xf]
        %v888 = vld [vmem:[%s878 + $0x24] sm:$0xf]
        %v889 = vld [vmem:[%s878 + $0x28] sm:$0xf]
        %v890 = vld [vmem:[%s878 + $0x2c] sm:$0xf]
        %v891 = vld [vmem:[%s878 + $0x30] sm:$0xf]
        %v892 = vld [vmem:[%s878 + $0x34] sm:$0xf]
        %v893 = vld [vmem:[%s878 + $0x38] sm:$0xf]
        %v894 = vld [vmem:[%s878 + $0x3c] sm:$0xf]
        %v911 = vunpack.c.l.b16 %v879
        %v912 = vunpack.c.l.b16 %v880
        %v913 = vunpack.c.l.b16 %v881
        %v914 = vunpack.c.l.b16 %v882
        %v915 = vunpack.c.l.b16 %v883
        %v916 = vunpack.c.l.b16 %v884
        %v917 = vunpack.c.l.b16 %v885
        %v918 = vunpack.c.l.b16 %v886
        %v919 = vunpack.c.l.b16 %v887
        %v920 = vunpack.c.l.b16 %v888
        %v921 = vunpack.c.l.b16 %v889
        %v922 = vunpack.c.l.b16 %v890
        %v923 = vunpack.c.l.b16 %v891
        %v924 = vunpack.c.l.b16 %v892
        %v925 = vunpack.c.l.b16 %v893
        %v926 = vunpack.c.l.b16 %v894
        %v927 = vpack.c.b16 %v912, %v911
        %v928 = vpack.c.b16 %v914, %v913
        %v929 = vpack.c.b16 %v916, %v915
        %v930 = vpack.c.b16 %v918, %v917
        %v931 = vpack.c.b16 %v920, %v919
        %v932 = vpack.c.b16 %v922, %v921
        %v933 = vpack.c.b16 %v924, %v923
        %v934 = vpack.c.b16 %v926, %v925
        %943 = vmatpush.bf16.msra.mxu0 %v934
        %944 = vmatpush.bf16.msra.mxu0 %v933
        %945 = vmatpush.bf16.msra.mxu0 %v932
        %946 = vmatpush.bf16.msra.mxu0 %v931
        %947 = vmatpush.bf16.msra.mxu0 %v930
        %948 = vmatpush.bf16.msra.mxu0 %v929
        %949 = vmatpush.bf16.msra.mxu0 %v928
        %950 = vmatpush.bf16.msra.mxu0 %v927
        %951 = vmatmul.bf16.gmra.mxu0 %v877
        %v952 = vpop.f32.mrf.mxu0
        %v953 = vadd.f32 0.0, %v952
        %v954 = vpop.f32.mrf.mxu0
        %955 = vdwg.mxu0
        %v956 = vld [vmem:[%s6 + $0x2] sm:$0x1]
        %v957 = vmul.f32 %v953, %v956
        %v958 = vld [vmem:[%s7 + $0x2] sm:$0x1]
        %v959 = vadd.f32 %v957, %v958
        %v960 = vmax.f32 %v959, 0.0
        %961 = vst.msk [vmem:[%s298 + $0x2] sm:$0x1] %vm790, %v960
        %v962 = vpack.c.bf16 %v674, %v674
        %s963 = scalar_lea.vmem %s5, 192
        %v964 = vld [vmem:[%s963] sm:$0xf]
        %v965 = vld [vmem:[%s963 + $0x4] sm:$0xf]
        %v966 = vld [vmem:[%s963 + $0x8] sm:$0xf]
        %v967 = vld [vmem:[%s963 + $0xc] sm:$0xf]
        %v968 = vld [vmem:[%s963 + $0x10] sm:$0xf]
        %v969 = vld [vmem:[%s963 + $0x14] sm:$0xf]
        %v970 = vld [vmem:[%s963 + $0x18] sm:$0xf]
        %v971 = vld [vmem:[%s963 + $0x1c] sm:$0xf]
        %v972 = vld [vmem:[%s963 + $0x20] sm:$0xf]
        %v973 = vld [vmem:[%s963 + $0x24] sm:$0xf]
        %v974 = vld [vmem:[%s963 + $0x28] sm:$0xf]
        %v975 = vld [vmem:[%s963 + $0x2c] sm:$0xf]
        %v976 = vld [vmem:[%s963 + $0x30] sm:$0xf]
        %v977 = vld [vmem:[%s963 + $0x34] sm:$0xf]
        %v978 = vld [vmem:[%s963 + $0x38] sm:$0xf]
        %v979 = vld [vmem:[%s963 + $0x3c] sm:$0xf]
        %v996 = vunpack.c.l.b16 %v964
        %v997 = vunpack.c.l.b16 %v965
        %v998 = vunpack.c.l.b16 %v966
        %v999 = vunpack.c.l.b16 %v967
        %v1000 = vunpack.c.l.b16 %v968
        %v1001 = vunpack.c.l.b16 %v969
        %v1002 = vunpack.c.l.b16 %v970
        %v1003 = vunpack.c.l.b16 %v971
        %v1004 = vunpack.c.l.b16 %v972
        %v1005 = vunpack.c.l.b16 %v973
        %v1006 = vunpack.c.l.b16 %v974
        %v1007 = vunpack.c.l.b16 %v975
        %v1008 = vunpack.c.l.b16 %v976
        %v1009 = vunpack.c.l.b16 %v977
        %v1010 = vunpack.c.l.b16 %v978
        %v1011 = vunpack.c.l.b16 %v979
        %v1012 = vpack.c.b16 %v997, %v996
        %v1013 = vpack.c.b16 %v999, %v998
        %v1014 = vpack.c.b16 %v1001, %v1000
        %v1015 = vpack.c.b16 %v1003, %v1002
        %v1016 = vpack.c.b16 %v1005, %v1004
        %v1017 = vpack.c.b16 %v1007, %v1006
        %v1018 = vpack.c.b16 %v1009, %v1008
        %v1019 = vpack.c.b16 %v1011, %v1010
        %1028 = vmatpush.bf16.msra.mxu0 %v1019
        %1029 = vmatpush.bf16.msra.mxu0 %v1018
        %1030 = vmatpush.bf16.msra.mxu0 %v1017
        %1031 = vmatpush.bf16.msra.mxu0 %v1016
        %1032 = vmatpush.bf16.msra.mxu0 %v1015
        %1033 = vmatpush.bf16.msra.mxu0 %v1014
        %1034 = vmatpush.bf16.msra.mxu0 %v1013
        %1035 = vmatpush.bf16.msra.mxu0 %v1012
        %1036 = vmatmul.bf16.gmra.mxu0 %v962
        %v1037 = vpop.f32.mrf.mxu0
        %v1038 = vadd.f32 0.0, %v1037
        %v1039 = vpop.f32.mrf.mxu0
        %1040 = vdwg.mxu0
        %v1041 = vld [vmem:[%s6 + $0x3] sm:$0x1]
        %v1042 = vmul.f32 %v1038, %v1041
        %v1043 = vld [vmem:[%s7 + $0x3] sm:$0x1]
        %v1044 = vadd.f32 %v1042, %v1043
        %v1045 = vmax.f32 %v1044, 0.0
        %1046 = vst.msk [vmem:[%s298 + $0x3] sm:$0x1] %vm790, %v1045
        %v1047 = vpack.c.bf16 %v682, %v682
        %s1048 = scalar_lea.vmem %s5, 256
        %v1049 = vld [vmem:[%s1048] sm:$0xf]
        %v1050 = vld [vmem:[%s1048 + $0x4] sm:$0xf]
        %v1051 = vld [vmem:[%s1048 + $0x8] sm:$0xf]
        %v1052 = vld [vmem:[%s1048 + $0xc] sm:$0xf]
        %v1053 = vld [vmem:[%s1048 + $0x10] sm:$0xf]
        %v1054 = vld [vmem:[%s1048 + $0x14] sm:$0xf]
        %v1055 = vld [vmem:[%s1048 + $0x18] sm:$0xf]
        %v1056 = vld [vmem:[%s1048 + $0x1c] sm:$0xf]
        %v1057 = vld [vmem:[%s1048 + $0x20] sm:$0xf]
        %v1058 = vld [vmem:[%s1048 + $0x24] sm:$0xf]
        %v1059 = vld [vmem:[%s1048 + $0x28] sm:$0xf]
        %v1060 = vld [vmem:[%s1048 + $0x2c] sm:$0xf]
        %v1061 = vld [vmem:[%s1048 + $0x30] sm:$0xf]
        %v1062 = vld [vmem:[%s1048 + $0x34] sm:$0xf]
        %v1063 = vld [vmem:[%s1048 + $0x38] sm:$0xf]
        %v1064 = vld [vmem:[%s1048 + $0x3c] sm:$0xf]
        %v1081 = vunpack.c.l.b16 %v1049
        %v1082 = vunpack.c.l.b16 %v1050
        %v1083 = vunpack.c.l.b16 %v1051
        %v1084 = vunpack.c.l.b16 %v1052
        %v1085 = vunpack.c.l.b16 %v1053
        %v1086 = vunpack.c.l.b16 %v1054
        %v1087 = vunpack.c.l.b16 %v1055
        %v1088 = vunpack.c.l.b16 %v1056
        %v1089 = vunpack.c.l.b16 %v1057
        %v1090 = vunpack.c.l.b16 %v1058
        %v1091 = vunpack.c.l.b16 %v1059
        %v1092 = vunpack.c.l.b16 %v1060
        %v1093 = vunpack.c.l.b16 %v1061
        %v1094 = vunpack.c.l.b16 %v1062
        %v1095 = vunpack.c.l.b16 %v1063
        %v1096 = vunpack.c.l.b16 %v1064
        %v1097 = vpack.c.b16 %v1082, %v1081
        %v1098 = vpack.c.b16 %v1084, %v1083
        %v1099 = vpack.c.b16 %v1086, %v1085
        %v1100 = vpack.c.b16 %v1088, %v1087
        %v1101 = vpack.c.b16 %v1090, %v1089
        %v1102 = vpack.c.b16 %v1092, %v1091
        %v1103 = vpack.c.b16 %v1094, %v1093
        %v1104 = vpack.c.b16 %v1096, %v1095
        %1113 = vmatpush.bf16.msra.mxu0 %v1104
        %1114 = vmatpush.bf16.msra.mxu0 %v1103
        %1115 = vmatpush.bf16.msra.mxu0 %v1102
        %1116 = vmatpush.bf16.msra.mxu0 %v1101
        %1117 = vmatpush.bf16.msra.mxu0 %v1100
        %1118 = vmatpush.bf16.msra.mxu0 %v1099
        %1119 = vmatpush.bf16.msra.mxu0 %v1098
        %1120 = vmatpush.bf16.msra.mxu0 %v1097
        %1121 = vmatmul.bf16.gmra.mxu0 %v1047
        %v1122 = vpop.f32.mrf.mxu0
        %v1123 = vadd.f32 0.0, %v1122
        %v1124 = vpop.f32.mrf.mxu0
        %1125 = vdwg.mxu0
        %v1126 = vld [vmem:[%s6 + $0x4] sm:$0x1]
        %v1127 = vmul.f32 %v1123, %v1126
        %v1128 = vld [vmem:[%s7 + $0x4] sm:$0x1]
        %v1129 = vadd.f32 %v1127, %v1128
        %v1130 = vmax.f32 %v1129, 0.0
        %1131 = vst.msk [vmem:[%s298 + $0x4] sm:$0x1] %vm790, %v1130
        %v1132 = vpack.c.bf16 %v689, %v689
        %s1133 = scalar_lea.vmem %s5, 320
        %v1134 = vld [vmem:[%s1133] sm:$0xf]
        %v1135 = vld [vmem:[%s1133 + $0x4] sm:$0xf]
        %v1136 = vld [vmem:[%s1133 + $0x8] sm:$0xf]
        %v1137 = vld [vmem:[%s1133 + $0xc] sm:$0xf]
        %v1138 = vld [vmem:[%s1133 + $0x10] sm:$0xf]
        %v1139 = vld [vmem:[%s1133 + $0x14] sm:$0xf]
        %v1140 = vld [vmem:[%s1133 + $0x18] sm:$0xf]
        %v1141 = vld [vmem:[%s1133 + $0x1c] sm:$0xf]
        %v1142 = vld [vmem:[%s1133 + $0x20] sm:$0xf]
        %v1143 = vld [vmem:[%s1133 + $0x24] sm:$0xf]
        %v1144 = vld [vmem:[%s1133 + $0x28] sm:$0xf]
        %v1145 = vld [vmem:[%s1133 + $0x2c] sm:$0xf]
        %v1146 = vld [vmem:[%s1133 + $0x30] sm:$0xf]
        %v1147 = vld [vmem:[%s1133 + $0x34] sm:$0xf]
        %v1148 = vld [vmem:[%s1133 + $0x38] sm:$0xf]
        %v1149 = vld [vmem:[%s1133 + $0x3c] sm:$0xf]
        %v1166 = vunpack.c.l.b16 %v1134
        %v1167 = vunpack.c.l.b16 %v1135
        %v1168 = vunpack.c.l.b16 %v1136
        %v1169 = vunpack.c.l.b16 %v1137
        %v1170 = vunpack.c.l.b16 %v1138
        %v1171 = vunpack.c.l.b16 %v1139
        %v1172 = vunpack.c.l.b16 %v1140
        %v1173 = vunpack.c.l.b16 %v1141
        %v1174 = vunpack.c.l.b16 %v1142
        %v1175 = vunpack.c.l.b16 %v1143
        %v1176 = vunpack.c.l.b16 %v1144
        %v1177 = vunpack.c.l.b16 %v1145
        %v1178 = vunpack.c.l.b16 %v1146
        %v1179 = vunpack.c.l.b16 %v1147
        %v1180 = vunpack.c.l.b16 %v1148
        %v1181 = vunpack.c.l.b16 %v1149
        %v1182 = vpack.c.b16 %v1167, %v1166
        %v1183 = vpack.c.b16 %v1169, %v1168
        %v1184 = vpack.c.b16 %v1171, %v1170
        %v1185 = vpack.c.b16 %v1173, %v1172
        %v1186 = vpack.c.b16 %v1175, %v1174
        %v1187 = vpack.c.b16 %v1177, %v1176
        %v1188 = vpack.c.b16 %v1179, %v1178
        %v1189 = vpack.c.b16 %v1181, %v1180
        %1198 = vmatpush.bf16.msra.mxu0 %v1189
        %1199 = vmatpush.bf16.msra.mxu0 %v1188
        %1200 = vmatpush.bf16.msra.mxu0 %v1187
        %1201 = vmatpush.bf16.msra.mxu0 %v1186
        %1202 = vmatpush.bf16.msra.mxu0 %v1185
        %1203 = vmatpush.bf16.msra.mxu0 %v1184
        %1204 = vmatpush.bf16.msra.mxu0 %v1183
        %1205 = vmatpush.bf16.msra.mxu0 %v1182
        %1206 = vmatmul.bf16.gmra.mxu0 %v1132
        %v1207 = vpop.f32.mrf.mxu0
        %v1208 = vadd.f32 0.0, %v1207
        %v1209 = vpop.f32.mrf.mxu0
        %1210 = vdwg.mxu0
        %v1211 = vld [vmem:[%s6 + $0x5] sm:$0x1]
        %v1212 = vmul.f32 %v1208, %v1211
        %v1213 = vld [vmem:[%s7 + $0x5] sm:$0x1]
        %v1214 = vadd.f32 %v1212, %v1213
        %v1215 = vmax.f32 %v1214, 0.0
        %1216 = vst.msk [vmem:[%s298 + $0x5] sm:$0x1] %vm790, %v1215
        %v1217 = vpack.c.bf16 %v696, %v696
        %s1218 = scalar_lea.vmem %s5, 384
        %v1219 = vld [vmem:[%s1218] sm:$0xf]
        %v1220 = vld [vmem:[%s1218 + $0x4] sm:$0xf]
        %v1221 = vld [vmem:[%s1218 + $0x8] sm:$0xf]
        %v1222 = vld [vmem:[%s1218 + $0xc] sm:$0xf]
        %v1223 = vld [vmem:[%s1218 + $0x10] sm:$0xf]
        %v1224 = vld [vmem:[%s1218 + $0x14] sm:$0xf]
        %v1225 = vld [vmem:[%s1218 + $0x18] sm:$0xf]
        %v1226 = vld [vmem:[%s1218 + $0x1c] sm:$0xf]
        %v1227 = vld [vmem:[%s1218 + $0x20] sm:$0xf]
        %v1228 = vld [vmem:[%s1218 + $0x24] sm:$0xf]
        %v1229 = vld [vmem:[%s1218 + $0x28] sm:$0xf]
        %v1230 = vld [vmem:[%s1218 + $0x2c] sm:$0xf]
        %v1231 = vld [vmem:[%s1218 + $0x30] sm:$0xf]
        %v1232 = vld [vmem:[%s1218 + $0x34] sm:$0xf]
        %v1233 = vld [vmem:[%s1218 + $0x38] sm:$0xf]
        %v1234 = vld [vmem:[%s1218 + $0x3c] sm:$0xf]
        %v1251 = vunpack.c.l.b16 %v1219
        %v1252 = vunpack.c.l.b16 %v1220
        %v1253 = vunpack.c.l.b16 %v1221
        %v1254 = vunpack.c.l.b16 %v1222
        %v1255 = vunpack.c.l.b16 %v1223
        %v1256 = vunpack.c.l.b16 %v1224
        %v1257 = vunpack.c.l.b16 %v1225
        %v1258 = vunpack.c.l.b16 %v1226
        %v1259 = vunpack.c.l.b16 %v1227
        %v1260 = vunpack.c.l.b16 %v1228
        %v1261 = vunpack.c.l.b16 %v1229
        %v1262 = vunpack.c.l.b16 %v1230
        %v1263 = vunpack.c.l.b16 %v1231
        %v1264 = vunpack.c.l.b16 %v1232
        %v1265 = vunpack.c.l.b16 %v1233
        %v1266 = vunpack.c.l.b16 %v1234
        %v1267 = vpack.c.b16 %v1252, %v1251
        %v1268 = vpack.c.b16 %v1254, %v1253
        %v1269 = vpack.c.b16 %v1256, %v1255
        %v1270 = vpack.c.b16 %v1258, %v1257
        %v1271 = vpack.c.b16 %v1260, %v1259
        %v1272 = vpack.c.b16 %v1262, %v1261
        %v1273 = vpack.c.b16 %v1264, %v1263
        %v1274 = vpack.c.b16 %v1266, %v1265
        %1283 = vmatpush.bf16.msra.mxu0 %v1274
        %1284 = vmatpush.bf16.msra.mxu0 %v1273
        %1285 = vmatpush.bf16.msra.mxu0 %v1272
        %1286 = vmatpush.bf16.msra.mxu0 %v1271
        %1287 = vmatpush.bf16.msra.mxu0 %v1270
        %1288 = vmatpush.bf16.msra.mxu0 %v1269
        %1289 = vmatpush.bf16.msra.mxu0 %v1268
        %1290 = vmatpush.bf16.msra.mxu0 %v1267
        %1291 = vmatmul.bf16.gmra.mxu0 %v1217
        %v1292 = vpop.f32.mrf.mxu0
        %v1293 = vadd.f32 0.0, %v1292
        %v1294 = vpop.f32.mrf.mxu0
        %1295 = vdwg.mxu0
        %v1296 = vld [vmem:[%s6 + $0x6] sm:$0x1]
        %v1297 = vmul.f32 %v1293, %v1296
        %v1298 = vld [vmem:[%s7 + $0x6] sm:$0x1]
        %v1299 = vadd.f32 %v1297, %v1298
        %v1300 = vmax.f32 %v1299, 0.0
        %1301 = vst.msk [vmem:[%s298 + $0x6] sm:$0x1] %vm790, %v1300
        %v1302 = vpack.c.bf16 %v703, %v703
        %s1303 = scalar_lea.vmem %s5, 448
        %v1304 = vld [vmem:[%s1303] sm:$0xf]
        %v1305 = vld [vmem:[%s1303 + $0x4] sm:$0xf]
        %v1306 = vld [vmem:[%s1303 + $0x8] sm:$0xf]
        %v1307 = vld [vmem:[%s1303 + $0xc] sm:$0xf]
        %v1308 = vld [vmem:[%s1303 + $0x10] sm:$0xf]
        %v1309 = vld [vmem:[%s1303 + $0x14] sm:$0xf]
        %v1310 = vld [vmem:[%s1303 + $0x18] sm:$0xf]
        %v1311 = vld [vmem:[%s1303 + $0x1c] sm:$0xf]
        %v1312 = vld [vmem:[%s1303 + $0x20] sm:$0xf]
        %v1313 = vld [vmem:[%s1303 + $0x24] sm:$0xf]
        %v1314 = vld [vmem:[%s1303 + $0x28] sm:$0xf]
        %v1315 = vld [vmem:[%s1303 + $0x2c] sm:$0xf]
        %v1316 = vld [vmem:[%s1303 + $0x30] sm:$0xf]
        %v1317 = vld [vmem:[%s1303 + $0x34] sm:$0xf]
        %v1318 = vld [vmem:[%s1303 + $0x38] sm:$0xf]
        %v1319 = vld [vmem:[%s1303 + $0x3c] sm:$0xf]
        %v1336 = vunpack.c.l.b16 %v1304
        %v1337 = vunpack.c.l.b16 %v1305
        %v1338 = vunpack.c.l.b16 %v1306
        %v1339 = vunpack.c.l.b16 %v1307
        %v1340 = vunpack.c.l.b16 %v1308
        %v1341 = vunpack.c.l.b16 %v1309
        %v1342 = vunpack.c.l.b16 %v1310
        %v1343 = vunpack.c.l.b16 %v1311
        %v1344 = vunpack.c.l.b16 %v1312
        %v1345 = vunpack.c.l.b16 %v1313
        %v1346 = vunpack.c.l.b16 %v1314
        %v1347 = vunpack.c.l.b16 %v1315
        %v1348 = vunpack.c.l.b16 %v1316
        %v1349 = vunpack.c.l.b16 %v1317
        %v1350 = vunpack.c.l.b16 %v1318
        %v1351 = vunpack.c.l.b16 %v1319
        %v1352 = vpack.c.b16 %v1337, %v1336
        %v1353 = vpack.c.b16 %v1339, %v1338
        %v1354 = vpack.c.b16 %v1341, %v1340
        %v1355 = vpack.c.b16 %v1343, %v1342
        %v1356 = vpack.c.b16 %v1345, %v1344
        %v1357 = vpack.c.b16 %v1347, %v1346
        %v1358 = vpack.c.b16 %v1349, %v1348
        %v1359 = vpack.c.b16 %v1351, %v1350
        %1368 = vmatpush.bf16.msra.mxu0 %v1359
        %1369 = vmatpush.bf16.msra.mxu0 %v1358
        %1370 = vmatpush.bf16.msra.mxu0 %v1357
        %1371 = vmatpush.bf16.msra.mxu0 %v1356
        %1372 = vmatpush.bf16.msra.mxu0 %v1355
        %1373 = vmatpush.bf16.msra.mxu0 %v1354
        %1374 = vmatpush.bf16.msra.mxu0 %v1353
        %1375 = vmatpush.bf16.msra.mxu0 %v1352
        %1376 = vmatmul.bf16.gmra.mxu0 %v1302
        %v1377 = vpop.f32.mrf.mxu0
        %v1378 = vadd.f32 0.0, %v1377
        %v1379 = vpop.f32.mrf.mxu0
        %1380 = vdwg.mxu0
        %v1381 = vld [vmem:[%s6 + $0x7] sm:$0x1]
        %v1382 = vmul.f32 %v1378, %v1381
        %v1383 = vld [vmem:[%s7 + $0x7] sm:$0x1]
        %v1384 = vadd.f32 %v1382, %v1383
        %v1385 = vmax.f32 %v1384, 0.0
        %1386 = vst.msk [vmem:[%s298 + $0x7] sm:$0x1] %vm790, %v1385
        %s1387 = sand.u32 %s203, 1
        %s1388 = scalar_lea.sflag [#allocation3], %s1387
        %s1389 = sand.u32 %s203, 1
        %s1390 = smul.addr %s1389, 8
        %s1391 = scalar_lea.vmem [#allocation2], %s1390
        // Predicated region
        $region53: #{tpu_custom_call.1} parent=51 // pred_check
          %p1392 = pneg %p213
        $region54: #{tpu_custom_call.1} parent=51 // pred_check_branch
          %1394 = sbr.rel (%p1392) target = $region56
        $region55: #{tpu_custom_call.1} parent=51 // pred_region
          %1396 = vsyncadd %s1388, 0
          %s1397 = smul.addr %s22, 8
          %s1398 = scalar_lea.hbm %s8, %s1397
          %s1400 = sshll.u32 %s1391, 4
          %s1401 = int_to_ptr.vmem [resolvable:$true] %s1400
          %s1402 = sshll.u32 %s1398, 4
          %s1403 = int_to_ptr.hbm [resolvable:$true] %s1402
          %1405 = dma.vmem_to_hbm [thread:$0]  %s1401, 128, %s1403, %s1388
        $region56: #{tpu_custom_call.1} parent=51 // pred_fallthru
          _
      $region52: #{tpu_custom_call.1} parent=5 // pred_fallthru
        _
      %p1406 = scmp.le.s32.totalorder 2, %s17
      // Predicated region
      $region57: #{tpu_custom_call.1} parent=5 // pred_check
        %p1407 = pneg %p1406
      $region58: #{tpu_custom_call.1} parent=5 // pred_check_branch
        %1409 = sbr.rel (%p1407) target = $region60
      $region59: #{tpu_custom_call.1} parent=5 // pred_region
        %s1410 = ssub.s32 %s17, 2
        // Predicated region
        $region61: #{tpu_custom_call.1} parent=59 // pred_check
          %p1411 = pneg %p219
        $region62: #{tpu_custom_call.1} parent=59 // pred_check_branch
          %1413 = sbr.rel (%p1411) target = $region64
        $region63: #{tpu_custom_call.1} parent=59 // pred_region
          %s1414 = sand.u32 %s204, 1
          %s1415 = scalar_lea.sflag [#allocation3], %s1414
          %s1416 = sand.u32 %s204, 1
          %s1417 = smul.addr %s1416, 8
          %s1418 = scalar_lea.vmem [#allocation2], %s1417
          %1420 = dma.done %s1415, 128
        $region64: #{tpu_custom_call.1} parent=59 // pred_fallthru
          _
      $region60: #{tpu_custom_call.1} parent=5 // pred_fallthru
        _
    $region6: #{tpu_custom_call.1} parent=1 // loop_footer
      %s21 = sadd.s32 1, %s17
    $region7: #{tpu_custom_call.1} parent=1 // loop_footer_branch
      %16 = sbr.rel target = $region3
    $region8: #{tpu_custom_call.1} parent=1 // loop_exit
      _
    %1421 = vsyncpa [#allocation3], 1
    %s1422 = scalar_lea.sflag [#allocation3], 1
    %1423 = vsyncpa %s1422, 1

</llo_original>
